<compile_context>
chip_gen: v5e
topology: v5e:2x2
jax: 0.10.0
libtpu: 0.0.40
codegen_flags: <defaults>
</compile_context>

<pallas_src>
import functools

import jax
import jax.numpy as jnp
from jax.experimental import pallas as pl
from jax.experimental.pallas import tpu as pltpu

_LN_EPS = 1e-5  # nn.LayerNorm default

# Rows of the per-encoder (9, E) vector pack.
_GQ, _BLNQ, _BQ, _BK, _BV, _PNW, _PNB, _BO, _BOUT = range(9)
_NUM_VEC = 9
# Column blocks (each E lanes wide) of the per-encoder (E, 6E) weight pack.
_WQ, _WK, _WV, _WO, _WOUT, _HMASK = range(6)
_NUM_W = 6


def _erf(x):
    # Abramowitz & Stegun 7.1.26 rational approximation (|err| <= 1.5e-7);
    # uses only ops that lower cleanly in Mosaic (exp/mul/add/where/div).
    a1, a2, a3, a4, a5 = (0.254829592, -0.284496736, 1.421413741,
                          -1.453152027, 1.061405429)
    p = 0.3275911
    sign = jnp.where(x >= 0.0, 1.0, -1.0)
    ax = jnp.abs(x)
    t = 1.0 / (1.0 + p * ax)
    poly = ((((a5 * t + a4) * t + a3) * t + a2) * t + a1) * t
    return sign * (1.0 - poly * jnp.exp(-ax * ax))


def _gelu_exact(x):
    # torch.nn.functional.gelu default is the exact erf-based GELU.
    return 0.5 * x * (1.0 + _erf(x * 0.7071067811865476))


def _norm_hat(x):
    # LayerNorm without gain/bias: (x - mu) * rsqrt(var + eps).
    mu = jnp.mean(x, axis=-1, keepdims=True)
    xc = x - mu
    var = jnp.mean(xc * xc, axis=-1, keepdims=True)
    return xc * jax.lax.rsqrt(var + _LN_EPS)


def _mm(x, w):
    # (B, L, K) @ (K, N) -> (B, L, N) via one 2-D MXU matmul
    # (leading dims collapsed; layout-compatible reshape).
    b, l, k = x.shape
    y = jnp.dot(x.reshape(b * l, k), w, preferred_element_type=jnp.float32)
    return y.reshape(b, l, w.shape[1])


def _encoder(q_in, kv_in, vec, w, *, self_attn):
    """One Encoder block. q_in: (B, Lq, E); kv_in: (B, Lk, E).

    vec: (9, E) packed vectors; w: (E, 6E) packed matrices (LN gains and the
    1/sqrt(head_dim) scale are pre-folded into the QKV blocks).
    """
    E = q_in.shape[-1]

    def vrow(i):
        return vec[i:i + 1, :]            # (1, E): broadcasts over (B, L, E)

    def wblk(i, n=1):
        return w[:, i * E:(i + n) * E]    # (E, n*E) static lane slice

    # Pre-norm "hat"; gains/biases live in the folded QKV weights, so only
    # the residual path needs the explicit normed query.
    qhat = _norm_hat(q_in)
    qn = qhat * vrow(_GQ) + vrow(_BLNQ)   # pre_norm_Q(Query), used for residual

    if self_attn:
        # mean/var computed once, ONE fused (E, 3E) projection.
        qkv = _mm(qhat, wblk(_WQ, 3))                       # (B, L, 3E)
        q = qkv[..., 0 * E:1 * E] + vrow(_BQ)
        k = qkv[..., 1 * E:2 * E] + vrow(_BK)
        v = qkv[..., 2 * E:3 * E] + vrow(_BV)
    else:
        khat = _norm_hat(kv_in)
        q = _mm(qhat, wblk(_WQ)) + vrow(_BQ)                # (B, Lq, E)
        kv = _mm(khat, wblk(_WK, 2))                        # fused K|V proj
        k = kv[..., 0 * E:1 * E] + vrow(_BK)
        v = kv[..., 1 * E:2 * E] + vrow(_BV)

    # --- multi-head attention without slicing activations per head ---
    # hmask[e, f] = 1 iff lanes e and f belong to the same head.  One matmul
    # against hmask turns the elementwise q*k product into per-head scores,
    # broadcast back over each head's Dh lanes, so softmax / context stay
    # full-lane.  1/sqrt(head_dim) is already folded into Wq; attention
    # dropout(p=0.25) is train-time only -> identity at inference.
    bsz, lq, _ = q.shape
    lk = k.shape[1]
    prod = q[:, :, None, :] * k[:, None, :, :]              # (B, Lq, Lk, E)
    s = jnp.dot(prod.reshape(bsz * lq * lk, E), wblk(_HMASK),
                preferred_element_type=jnp.float32)
    s = s.reshape(bsz, lq, lk, E)
    s = s - jnp.max(s, axis=2, keepdims=True)
    p = jnp.exp(s)
    p = p / jnp.sum(p, axis=2, keepdims=True)               # exact normalize
    ctx = jnp.sum(p * v[:, None, :, :], axis=2)             # (B, Lq, E)

    # ctx lanes are already in head-concat order -> single out-proj matmul.
    context = _mm(ctx, wblk(_WO)) + vrow(_BO)

    # Post-norm, residual against the *normed* query (PyTorch reassigns
    # Query = pre_norm_Q(Query) before `latent = Query + context`),
    # exact-GELU feed-forward, second residual.
    context = _norm_hat(context) * vrow(_PNW) + vrow(_PNB)
    latent = qn + context
    ff = _gelu_exact(_mm(latent, wblk(_WOUT)) + vrow(_BOUT))
    return latent + ff


def _stack_kernel(jet_ref, jettrk_ref, vec_ref, w_ref, out_ref, *, l_jet):
    # Encoder 1: self-attention over the jet_trk slab (both batches at once).
    x = jettrk_ref[...].astype(jnp.float32)
    jt_lat = _encoder(x, x, vec_ref[0], w_ref[0], self_attn=True)
    out_ref[:, l_jet:, :] = jt_lat.astype(out_ref.dtype)

    # Encoder 2: cross-attention, Q = jet, K = V = encoder-1 output; the
    # intermediate latent never leaves VMEM.
    q = jet_ref[...].astype(jnp.float32)
    jet_lat = _encoder(q, jt_lat, vec_ref[1], w_ref[1], self_attn=False)
    out_ref[:, :l_jet, :] = jet_lat.astype(out_ref.dtype)


def stack_forward(jet_embedding, jet_trk_embedding, trk_embedding, params):
    B, l_jet, E = jet_embedding.shape
    _, l_jt, _ = jet_trk_embedding.shape
    vecs = params["vecs"]          # (2, 9, E)
    weights = params["weights"]    # (2, E, 6E)

    kernel = functools.partial(_stack_kernel, l_jet=l_jet)
    vmem = pl.BlockSpec(memory_space=pltpu.MemorySpace.VMEM)

    # Grid-less call: everything (inputs, ~50 KB of packed params, the
    # combined output slab) is resident in VMEM for the single invocation.
    # A grid=(B,) + dimension_semantics=("parallel",) variant could split
    # the two batches across v7x's 2 TensorCores; measurement decides there.
    out = pl.pallas_call(
        kernel,
        out_shape=jax.ShapeDtypeStruct((B, l_jet + l_jt, E),
                                       jet_embedding.dtype),
        in_specs=[vmem, vmem, vmem, vmem],
        out_specs=vmem,
    )(jet_embedding, jet_trk_embedding, vecs, weights)

    # Free XLA slices split the combined slab; trk_embedding passes through
    # unchanged (trk_encoder / trk_cross_encoder / postprocess are never
    # called in Stack.forward).
    return out[:, :l_jet, :], out[:, l_jet:, :], trk_embedding


def _pack_encoder(key, embed_dim, num_heads):
    """Deterministic synthetic Encoder params, pre-folded & packed."""
    E = embed_dim
    head_dim = E // num_heads
    scale = head_dim ** -0.5
    ks = jax.random.split(key, 14)

    def w(kk, shape, s=0.05):
        return s * jax.random.normal(kk, shape, jnp.float32)

    def ln(kw, kb):
        return (1.0 + 0.1 * jax.random.normal(kw, (E,), jnp.float32),
                0.02 * jax.random.normal(kb, (E,), jnp.float32))

    g_q, b_q = ln(ks[0], ks[1])        # pre_norm_Q
    g_k, b_k = ln(ks[2], ks[3])        # pre_norm_K
    g_v, b_v = ln(ks[4], ks[5])        # pre_norm_V
    pn_w, pn_b = ln(ks[6], ks[7])      # post_norm

    in_proj_w = w(ks[8], (3 * E, E))       # nn.MultiheadAttention in_proj_weight
    in_proj_b = w(ks[9], (3 * E,), 0.02)   # in_proj_bias
    wq, wk, wv = in_proj_w[:E], in_proj_w[E:2 * E], in_proj_w[2 * E:]
    bq, bk, bv = in_proj_b[:E], in_proj_b[E:2 * E], in_proj_b[2 * E:]
    wo = w(ks[10], (E, E))                 # out_proj.weight (out, in)
    bo = w(ks[11], (E,), 0.02)
    wout = w(ks[12], (E, E))               # Encoder.out Linear weight (out, in)
    bout = w(ks[13], (E,), 0.02)

    # Fold LayerNorm gain into the projection weights and (LN bias @ W + b)
    # into one bias; fold 1/sqrt(head_dim) into the Q path.
    wq_f = (g_q[:, None] * wq.T) * scale
    bq_f = (b_q @ wq.T + bq) * scale
    wk_f = g_k[:, None] * wk.T
    bk_f = b_k @ wk.T + bk
    wv_f = g_v[:, None] * wv.T
    bv_f = b_v @ wv.T + bv

    # Head-membership mask: hmask[e, f] = 1 iff e and f are in the same head.
    hid = jnp.arange(E) // head_dim
    hmask = (hid[:, None] == hid[None, :]).astype(jnp.float32)

    weights = jnp.concatenate(
        [wq_f, wk_f, wv_f, wo.T, wout.T, hmask], axis=1)         # (E, 6E)
    vecs = jnp.stack(
        [g_q, b_q, bq_f, bk_f, bv_f, pn_w, pn_b, bo, bout], axis=0)  # (9, E)

    assert vecs.shape == (_NUM_VEC, E)
    assert weights.shape == (E, _NUM_W * E)
    return vecs, weights


def init_stack_params(key, embed_dim, num_heads):
    # Only the two encoders that Stack.forward actually uses.
    k1, k2 = jax.random.split(key)
    v1, w1 = _pack_encoder(k1, embed_dim, num_heads)   # jet_trk_encoder
    v2, w2 = _pack_encoder(k2, embed_dim, num_heads)   # jet_trk_cross_encoder
    return dict(vecs=jnp.stack([v1, v2], axis=0),      # (2, 9, E)
                weights=jnp.stack([w1, w2], axis=0))   # (2, E, 6E)


if __name__ == "__main__":
    B, E, H = 2, 32, 4
    L_JET, L_JETTRK, L_TRK = 4, 8, 8

    root = jax.random.PRNGKey(0)
    kx, kjt, kt, kp = jax.random.split(root, 4)
    jet_embedding = jax.random.normal(kx, (B, L_JET, E), jnp.float32)
    jet_trk_embedding = jax.random.normal(kjt, (B, L_JETTRK, E), jnp.float32)
    trk_embedding = jax.random.normal(kt, (B, L_TRK, E), jnp.float32)

    params = init_stack_params(kp, E, H)

    jet_out, jet_trk_out, trk_out = stack_forward(
        jet_embedding, jet_trk_embedding, trk_embedding, params)
    jax.block_until_ready((jet_out, jet_trk_out, trk_out))

    assert jet_out.shape == (B, L_JET, E)
    assert jet_trk_out.shape == (B, L_JETTRK, E)
    assert trk_out.shape == (B, L_TRK, E)
    assert bool(jnp.all(jnp.isfinite(jet_out)))
    assert bool(jnp.all(jnp.isfinite(jet_trk_out)))
    print("KERNEL_OK")
</pallas_src>

<mosaic_0001>
module attributes {stable_mosaic.version = 11 : i64} {
  func.func @_stack_kernel(%arg0: memref<2x4x32xf32, #tpu.memory_space<vmem>>, %arg1: memref<2x8x32xf32, #tpu.memory_space<vmem>>, %arg2: memref<2x9x32xf32, #tpu.memory_space<vmem>>, %arg3: memref<2x32x192xf32, #tpu.memory_space<vmem>>, %arg4: memref<2x12x32xf32, #tpu.memory_space<vmem>>) attributes {dimension_semantics = [], scalar_prefetch = 0 : i64, scratch_operands = 0 : i64, tpu.core_type = #tpu.core_type<tc>} {
    %c0 = arith.constant 0 : index
    %c0_0 = arith.constant 0 : index
    %c0_1 = arith.constant 0 : index
    %0 = vector.load %arg1[%c0, %c0_0, %c0_1] : memref<2x8x32xf32, #tpu.memory_space<vmem>>, vector<2x8x32xf32>
    %c0_2 = arith.constant 0 : index
    %c0_3 = arith.constant 0 : index
    %c0_4 = arith.constant 0 : index
    %1 = vector.load %arg2[%c0_2, %c0_3, %c0_4] : memref<2x9x32xf32, #tpu.memory_space<vmem>>, vector<1x9x32xf32>
    %2 = vector.shape_cast %1 : vector<1x9x32xf32> to vector<9x32xf32>
    %c0_5 = arith.constant 0 : index
    %c0_6 = arith.constant 0 : index
    %c0_7 = arith.constant 0 : index
    %3 = vector.load %arg3[%c0_5, %c0_6, %c0_7] : memref<2x32x192xf32, #tpu.memory_space<vmem>>, vector<1x32x192xf32>
    %4 = vector.shape_cast %3 : vector<1x32x192xf32> to vector<32x192xf32>
    %cst = arith.constant dense<0.000000e+00> : vector<2x8xf32>
    %5 = vector.multi_reduction <add>, %0, %cst [2] : vector<2x8x32xf32> to vector<2x8xf32>
    %6 = vector.shape_cast %5 : vector<2x8xf32> to vector<2x8x1xf32>
    %cst_8 = arith.constant 3.200000e+01 : f32
    %7 = vector.broadcast %cst_8 : f32 to vector<2x8x1xf32>
    %8 = arith.divf %6, %7 : vector<2x8x1xf32>
    %9 = vector.broadcast %8 : vector<2x8x1xf32> to vector<2x8x32xf32>
    %10 = arith.subf %0, %9 : vector<2x8x32xf32>
    %11 = arith.mulf %10, %10 : vector<2x8x32xf32>
    %cst_9 = arith.constant dense<0.000000e+00> : vector<2x8xf32>
    %12 = vector.multi_reduction <add>, %11, %cst_9 [2] : vector<2x8x32xf32> to vector<2x8xf32>
    %13 = vector.shape_cast %12 : vector<2x8xf32> to vector<2x8x1xf32>
    %cst_10 = arith.constant 3.200000e+01 : f32
    %14 = vector.broadcast %cst_10 : f32 to vector<2x8x1xf32>
    %15 = arith.divf %13, %14 : vector<2x8x1xf32>
    %cst_11 = arith.constant 9.99999974E-6 : f32
    %16 = vector.broadcast %cst_11 : f32 to vector<2x8x1xf32>
    %17 = arith.addf %15, %16 : vector<2x8x1xf32>
    %18 = math.rsqrt %17 : vector<2x8x1xf32>
    %19 = vector.broadcast %18 : vector<2x8x1xf32> to vector<2x8x32xf32>
    %20 = arith.mulf %10, %19 : vector<2x8x32xf32>
    %21 = vector.extract_strided_slice %2 {offsets = [0, 0], sizes = [1, 32], strides = [1, 1]} : vector<9x32xf32> to vector<1x32xf32>
    %22 = vector.shape_cast %21 : vector<1x32xf32> to vector<1x1x32xf32>
    %23 = vector.broadcast %22 : vector<1x1x32xf32> to vector<2x8x32xf32>
    %24 = arith.mulf %20, %23 : vector<2x8x32xf32>
    %25 = vector.extract_strided_slice %2 {offsets = [1, 0], sizes = [1, 32], strides = [1, 1]} : vector<9x32xf32> to vector<1x32xf32>
    %26 = vector.shape_cast %25 : vector<1x32xf32> to vector<1x1x32xf32>
    %27 = vector.broadcast %26 : vector<1x1x32xf32> to vector<2x8x32xf32>
    %28 = arith.addf %24, %27 : vector<2x8x32xf32>
    %29 = vector.extract_strided_slice %4 {offsets = [0, 0], sizes = [32, 96], strides = [1, 1]} : vector<32x192xf32> to vector<32x96xf32>
    %30 = vector.shape_cast %20 : vector<2x8x32xf32> to vector<16x32xf32>
    %cst_12 = arith.constant dense<0.000000e+00> : vector<16x96xf32>
    %31 = tpu.matmul %30, %29, %cst_12 {dimension_numbers = #tpu.dot_dimension_numbers<[1], [0], [0], [1], [0, 0, 1, 1], [], []>} : vector<16x32xf32>, vector<32x96xf32>, vector<16x96xf32> -> vector<16x96xf32>
    %32 = vector.shape_cast %31 : vector<16x96xf32> to vector<2x8x96xf32>
    %33 = vector.extract_strided_slice %32 {offsets = [0, 0, 0], sizes = [2, 8, 32], strides = [1, 1, 1]} : vector<2x8x96xf32> to vector<2x8x32xf32>
    %34 = vector.extract_strided_slice %2 {offsets = [2, 0], sizes = [1, 32], strides = [1, 1]} : vector<9x32xf32> to vector<1x32xf32>
    %35 = vector.shape_cast %34 : vector<1x32xf32> to vector<1x1x32xf32>
    %36 = vector.broadcast %35 : vector<1x1x32xf32> to vector<2x8x32xf32>
    %37 = arith.addf %33, %36 : vector<2x8x32xf32>
    %38 = vector.extract_strided_slice %32 {offsets = [0, 0, 32], sizes = [2, 8, 32], strides = [1, 1, 1]} : vector<2x8x96xf32> to vector<2x8x32xf32>
    %39 = vector.extract_strided_slice %2 {offsets = [3, 0], sizes = [1, 32], strides = [1, 1]} : vector<9x32xf32> to vector<1x32xf32>
    %40 = vector.shape_cast %39 : vector<1x32xf32> to vector<1x1x32xf32>
    %41 = vector.broadcast %40 : vector<1x1x32xf32> to vector<2x8x32xf32>
    %42 = arith.addf %38, %41 : vector<2x8x32xf32>
    %43 = vector.extract_strided_slice %32 {offsets = [0, 0, 64], sizes = [2, 8, 32], strides = [1, 1, 1]} : vector<2x8x96xf32> to vector<2x8x32xf32>
    %44 = vector.extract_strided_slice %2 {offsets = [4, 0], sizes = [1, 32], strides = [1, 1]} : vector<9x32xf32> to vector<1x32xf32>
    %45 = vector.shape_cast %44 : vector<1x32xf32> to vector<1x1x32xf32>
    %46 = vector.broadcast %45 : vector<1x1x32xf32> to vector<2x8x32xf32>
    %47 = arith.addf %43, %46 : vector<2x8x32xf32>
    %48 = vector.shape_cast %37 : vector<2x8x32xf32> to vector<2x8x1x32xf32>
    %49 = vector.shape_cast %42 : vector<2x8x32xf32> to vector<2x1x8x32xf32>
    %50 = vector.broadcast %48 : vector<2x8x1x32xf32> to vector<2x8x8x32xf32>
    %51 = vector.broadcast %49 : vector<2x1x8x32xf32> to vector<2x8x8x32xf32>
    %52 = arith.mulf %50, %51 : vector<2x8x8x32xf32>
    %53 = vector.shape_cast %52 : vector<2x8x8x32xf32> to vector<128x32xf32>
    %54 = vector.extract_strided_slice %4 {offsets = [0, 160], sizes = [32, 32], strides = [1, 1]} : vector<32x192xf32> to vector<32x32xf32>
    %cst_13 = arith.constant dense<0.000000e+00> : vector<128x32xf32>
    %55 = tpu.matmul %53, %54, %cst_13 {dimension_numbers = #tpu.dot_dimension_numbers<[1], [0], [0], [1], [0, 0, 1, 1], [], []>} : vector<128x32xf32>, vector<32x32xf32>, vector<128x32xf32> -> vector<128x32xf32>
    %56 = vector.shape_cast %55 : vector<128x32xf32> to vector<2x8x8x32xf32>
    %cst_14 = arith.constant dense<0xFF800000> : vector<2x8x32xf32>
    %57 = vector.multi_reduction <maximumf>, %56, %cst_14 [2] : vector<2x8x8x32xf32> to vector<2x8x32xf32>
    %58 = vector.shape_cast %57 : vector<2x8x32xf32> to vector<2x8x1x32xf32>
    %59 = vector.broadcast %58 : vector<2x8x1x32xf32> to vector<2x8x8x32xf32>
    %60 = arith.subf %56, %59 : vector<2x8x8x32xf32>
    %61 = math.exp %60 : vector<2x8x8x32xf32>
    %cst_15 = arith.constant dense<0.000000e+00> : vector<2x8x32xf32>
    %62 = vector.multi_reduction <add>, %61, %cst_15 [2] : vector<2x8x8x32xf32> to vector<2x8x32xf32>
    %63 = vector.shape_cast %62 : vector<2x8x32xf32> to vector<2x8x1x32xf32>
    %64 = vector.broadcast %63 : vector<2x8x1x32xf32> to vector<2x8x8x32xf32>
    %65 = arith.divf %61, %64 : vector<2x8x8x32xf32>
    %66 = vector.shape_cast %47 : vector<2x8x32xf32> to vector<2x1x8x32xf32>
    %67 = vector.broadcast %66 : vector<2x1x8x32xf32> to vector<2x8x8x32xf32>
    %68 = arith.mulf %65, %67 : vector<2x8x8x32xf32>
    %cst_16 = arith.constant dense<0.000000e+00> : vector<2x8x32xf32>
    %69 = vector.multi_reduction <add>, %68, %cst_16 [2] : vector<2x8x8x32xf32> to vector<2x8x32xf32>
    %70 = vector.extract_strided_slice %4 {offsets = [0, 96], sizes = [32, 32], strides = [1, 1]} : vector<32x192xf32> to vector<32x32xf32>
    %71 = vector.shape_cast %69 : vector<2x8x32xf32> to vector<16x32xf32>
    %cst_17 = arith.constant dense<0.000000e+00> : vector<16x32xf32>
    %72 = tpu.matmul %71, %70, %cst_17 {dimension_numbers = #tpu.dot_dimension_numbers<[1], [0], [0], [1], [0, 0, 1, 1], [], []>} : vector<16x32xf32>, vector<32x32xf32>, vector<16x32xf32> -> vector<16x32xf32>
    %73 = vector.shape_cast %72 : vector<16x32xf32> to vector<2x8x32xf32>
    %74 = vector.extract_strided_slice %2 {offsets = [7, 0], sizes = [1, 32], strides = [1, 1]} : vector<9x32xf32> to vector<1x32xf32>
    %75 = vector.shape_cast %74 : vector<1x32xf32> to vector<1x1x32xf32>
    %76 = vector.broadcast %75 : vector<1x1x32xf32> to vector<2x8x32xf32>
    %77 = arith.addf %73, %76 : vector<2x8x32xf32>
    %cst_18 = arith.constant dense<0.000000e+00> : vector<2x8xf32>
    %78 = vector.multi_reduction <add>, %77, %cst_18 [2] : vector<2x8x32xf32> to vector<2x8xf32>
    %79 = vector.shape_cast %78 : vector<2x8xf32> to vector<2x8x1xf32>
    %cst_19 = arith.constant 3.200000e+01 : f32
    %80 = vector.broadcast %cst_19 : f32 to vector<2x8x1xf32>
    %81 = arith.divf %79, %80 : vector<2x8x1xf32>
    %82 = vector.broadcast %81 : vector<2x8x1xf32> to vector<2x8x32xf32>
    %83 = arith.subf %77, %82 : vector<2x8x32xf32>
    %84 = arith.mulf %83, %83 : vector<2x8x32xf32>
    %cst_20 = arith.constant dense<0.000000e+00> : vector<2x8xf32>
    %85 = vector.multi_reduction <add>, %84, %cst_20 [2] : vector<2x8x32xf32> to vector<2x8xf32>
    %86 = vector.shape_cast %85 : vector<2x8xf32> to vector<2x8x1xf32>
    %cst_21 = arith.constant 3.200000e+01 : f32
    %87 = vector.broadcast %cst_21 : f32 to vector<2x8x1xf32>
    %88 = arith.divf %86, %87 : vector<2x8x1xf32>
    %cst_22 = arith.constant 9.99999974E-6 : f32
    %89 = vector.broadcast %cst_22 : f32 to vector<2x8x1xf32>
    %90 = arith.addf %88, %89 : vector<2x8x1xf32>
    %91 = math.rsqrt %90 : vector<2x8x1xf32>
    %92 = vector.broadcast %91 : vector<2x8x1xf32> to vector<2x8x32xf32>
    %93 = arith.mulf %83, %92 : vector<2x8x32xf32>
    %94 = vector.extract_strided_slice %2 {offsets = [5, 0], sizes = [1, 32], strides = [1, 1]} : vector<9x32xf32> to vector<1x32xf32>
    %95 = vector.shape_cast %94 : vector<1x32xf32> to vector<1x1x32xf32>
    %96 = vector.broadcast %95 : vector<1x1x32xf32> to vector<2x8x32xf32>
    %97 = arith.mulf %93, %96 : vector<2x8x32xf32>
    %98 = vector.extract_strided_slice %2 {offsets = [6, 0], sizes = [1, 32], strides = [1, 1]} : vector<9x32xf32> to vector<1x32xf32>
    %99 = vector.shape_cast %98 : vector<1x32xf32> to vector<1x1x32xf32>
    %100 = vector.broadcast %99 : vector<1x1x32xf32> to vector<2x8x32xf32>
    %101 = arith.addf %97, %100 : vector<2x8x32xf32>
    %102 = arith.addf %28, %101 : vector<2x8x32xf32>
    %103 = vector.extract_strided_slice %4 {offsets = [0, 128], sizes = [32, 32], strides = [1, 1]} : vector<32x192xf32> to vector<32x32xf32>
    %104 = vector.shape_cast %102 : vector<2x8x32xf32> to vector<16x32xf32>
    %cst_23 = arith.constant dense<0.000000e+00> : vector<16x32xf32>
    %105 = tpu.matmul %104, %103, %cst_23 {dimension_numbers = #tpu.dot_dimension_numbers<[1], [0], [0], [1], [0, 0, 1, 1], [], []>} : vector<16x32xf32>, vector<32x32xf32>, vector<16x32xf32> -> vector<16x32xf32>
    %106 = vector.shape_cast %105 : vector<16x32xf32> to vector<2x8x32xf32>
    %107 = vector.extract_strided_slice %2 {offsets = [8, 0], sizes = [1, 32], strides = [1, 1]} : vector<9x32xf32> to vector<1x32xf32>
    %108 = vector.shape_cast %107 : vector<1x32xf32> to vector<1x1x32xf32>
    %109 = vector.broadcast %108 : vector<1x1x32xf32> to vector<2x8x32xf32>
    %110 = arith.addf %106, %109 : vector<2x8x32xf32>
    %cst_24 = arith.constant 5.000000e-01 : f32
    %111 = vector.broadcast %cst_24 : f32 to vector<2x8x32xf32>
    %112 = arith.mulf %111, %110 : vector<2x8x32xf32>
    %cst_25 = arith.constant 0.707106769 : f32
    %113 = vector.broadcast %cst_25 : f32 to vector<2x8x32xf32>
    %114 = arith.mulf %110, %113 : vector<2x8x32xf32>
    %cst_26 = arith.constant 0.000000e+00 : f32
    %115 = vector.broadcast %cst_26 : f32 to vector<2x8x32xf32>
    %116 = arith.cmpf oge, %114, %115 : vector<2x8x32xf32>
    %cst_27 = arith.constant 1.000000e+00 : f32
    %cst_28 = arith.constant -1.000000e+00 : f32
    %117 = vector.broadcast %cst_27 : f32 to vector<2x8x32xf32>
    %118 = vector.broadcast %cst_28 : f32 to vector<2x8x32xf32>
    %119 = arith.select %116, %117, %118 : vector<2x8x32xi1>, vector<2x8x32xf32>
    %120 = math.absf %114 : vector<2x8x32xf32>
    %cst_29 = arith.constant 0.327591091 : f32
    %121 = vector.broadcast %cst_29 : f32 to vector<2x8x32xf32>
    %122 = arith.mulf %121, %120 : vector<2x8x32xf32>
    %cst_30 = arith.constant 1.000000e+00 : f32
    %123 = vector.broadcast %cst_30 : f32 to vector<2x8x32xf32>
    %124 = arith.addf %123, %122 : vector<2x8x32xf32>
    %cst_31 = arith.constant 1.000000e+00 : f32
    %125 = vector.broadcast %cst_31 : f32 to vector<2x8x32xf32>
    %126 = arith.divf %125, %124 : vector<2x8x32xf32>
    %cst_32 = arith.constant 1.06140542 : f32
    %127 = vector.broadcast %cst_32 : f32 to vector<2x8x32xf32>
    %128 = arith.mulf %127, %126 : vector<2x8x32xf32>
    %cst_33 = arith.constant -1.45315206 : f32
    %129 = vector.broadcast %cst_33 : f32 to vector<2x8x32xf32>
    %130 = arith.addf %128, %129 : vector<2x8x32xf32>
    %131 = arith.mulf %130, %126 : vector<2x8x32xf32>
    %cst_34 = arith.constant 1.42141378 : f32
    %132 = vector.broadcast %cst_34 : f32 to vector<2x8x32xf32>
    %133 = arith.addf %131, %132 : vector<2x8x32xf32>
    %134 = arith.mulf %133, %126 : vector<2x8x32xf32>
    %cst_35 = arith.constant -0.284496725 : f32
    %135 = vector.broadcast %cst_35 : f32 to vector<2x8x32xf32>
    %136 = arith.addf %134, %135 : vector<2x8x32xf32>
    %137 = arith.mulf %136, %126 : vector<2x8x32xf32>
    %cst_36 = arith.constant 0.254829586 : f32
    %138 = vector.broadcast %cst_36 : f32 to vector<2x8x32xf32>
    %139 = arith.addf %137, %138 : vector<2x8x32xf32>
    %140 = arith.mulf %139, %126 : vector<2x8x32xf32>
    %cst_37 = arith.constant 0.000000e+00 : f32
    %141 = vector.broadcast %cst_37 : f32 to vector<2x8x32xf32>
    %142 = arith.subf %141, %120 : vector<2x8x32xf32>
    %143 = arith.mulf %142, %120 : vector<2x8x32xf32>
    %144 = math.exp %143 : vector<2x8x32xf32>
    %145 = arith.mulf %140, %144 : vector<2x8x32xf32>
    %cst_38 = arith.constant 1.000000e+00 : f32
    %146 = vector.broadcast %cst_38 : f32 to vector<2x8x32xf32>
    %147 = arith.subf %146, %145 : vector<2x8x32xf32>
    %148 = arith.mulf %119, %147 : vector<2x8x32xf32>
    %cst_39 = arith.constant 1.000000e+00 : f32
    %149 = vector.broadcast %cst_39 : f32 to vector<2x8x32xf32>
    %150 = arith.addf %149, %148 : vector<2x8x32xf32>
    %151 = arith.mulf %112, %150 : vector<2x8x32xf32>
    %152 = arith.addf %102, %151 : vector<2x8x32xf32>
    %c0_40 = arith.constant 0 : index
    %c4 = arith.constant 4 : index
    %c0_41 = arith.constant 0 : index
    %153 = vector.load %arg4[%c0_40, %c4, %c0_41] : memref<2x12x32xf32, #tpu.memory_space<vmem>>, vector<2x8x32xf32>
    tpu.vector_store %arg4[%c0_40, %c4, %c0_41], %152 {strides = array<i32>} : memref<2x12x32xf32, #tpu.memory_space<vmem>>, vector<2x8x32xf32>,
    %c0_42 = arith.constant 0 : index
    %c0_43 = arith.constant 0 : index
    %c0_44 = arith.constant 0 : index
    %154 = vector.load %arg0[%c0_42, %c0_43, %c0_44] : memref<2x4x32xf32, #tpu.memory_space<vmem>>, vector<2x4x32xf32>
    %c1 = arith.constant 1 : index
    %c0_45 = arith.constant 0 : index
    %c0_46 = arith.constant 0 : index
    %155 = vector.load %arg2[%c1, %c0_45, %c0_46] : memref<2x9x32xf32, #tpu.memory_space<vmem>>, vector<1x9x32xf32>
    %156 = vector.shape_cast %155 : vector<1x9x32xf32> to vector<9x32xf32>
    %c1_47 = arith.constant 1 : index
    %c0_48 = arith.constant 0 : index
    %c0_49 = arith.constant 0 : index
    %157 = vector.load %arg3[%c1_47, %c0_48, %c0_49] : memref<2x32x192xf32, #tpu.memory_space<vmem>>, vector<1x32x192xf32>
    %158 = vector.shape_cast %157 : vector<1x32x192xf32> to vector<32x192xf32>
    %cst_50 = arith.constant dense<0.000000e+00> : vector<2x4xf32>
    %159 = vector.multi_reduction <add>, %154, %cst_50 [2] : vector<2x4x32xf32> to vector<2x4xf32>
    %160 = vector.shape_cast %159 : vector<2x4xf32> to vector<2x4x1xf32>
    %cst_51 = arith.constant 3.200000e+01 : f32
    %161 = vector.broadcast %cst_51 : f32 to vector<2x4x1xf32>
    %162 = arith.divf %160, %161 : vector<2x4x1xf32>
    %163 = vector.broadcast %162 : vector<2x4x1xf32> to vector<2x4x32xf32>
    %164 = arith.subf %154, %163 : vector<2x4x32xf32>
    %165 = arith.mulf %164, %164 : vector<2x4x32xf32>
    %cst_52 = arith.constant dense<0.000000e+00> : vector<2x4xf32>
    %166 = vector.multi_reduction <add>, %165, %cst_52 [2] : vector<2x4x32xf32> to vector<2x4xf32>
    %167 = vector.shape_cast %166 : vector<2x4xf32> to vector<2x4x1xf32>
    %cst_53 = arith.constant 3.200000e+01 : f32
    %168 = vector.broadcast %cst_53 : f32 to vector<2x4x1xf32>
    %169 = arith.divf %167, %168 : vector<2x4x1xf32>
    %cst_54 = arith.constant 9.99999974E-6 : f32
    %170 = vector.broadcast %cst_54 : f32 to vector<2x4x1xf32>
    %171 = arith.addf %169, %170 : vector<2x4x1xf32>
    %172 = math.rsqrt %171 : vector<2x4x1xf32>
    %173 = vector.broadcast %172 : vector<2x4x1xf32> to vector<2x4x32xf32>
    %174 = arith.mulf %164, %173 : vector<2x4x32xf32>
    %175 = vector.extract_strided_slice %156 {offsets = [0, 0], sizes = [1, 32], strides = [1, 1]} : vector<9x32xf32> to vector<1x32xf32>
    %176 = vector.shape_cast %175 : vector<1x32xf32> to vector<1x1x32xf32>
    %177 = vector.broadcast %176 : vector<1x1x32xf32> to vector<2x4x32xf32>
    %178 = arith.mulf %174, %177 : vector<2x4x32xf32>
    %179 = vector.extract_strided_slice %156 {offsets = [1, 0], sizes = [1, 32], strides = [1, 1]} : vector<9x32xf32> to vector<1x32xf32>
    %180 = vector.shape_cast %179 : vector<1x32xf32> to vector<1x1x32xf32>
    %181 = vector.broadcast %180 : vector<1x1x32xf32> to vector<2x4x32xf32>
    %182 = arith.addf %178, %181 : vector<2x4x32xf32>
    %cst_55 = arith.constant dense<0.000000e+00> : vector<2x8xf32>
    %183 = vector.multi_reduction <add>, %152, %cst_55 [2] : vector<2x8x32xf32> to vector<2x8xf32>
    %184 = vector.shape_cast %183 : vector<2x8xf32> to vector<2x8x1xf32>
    %cst_56 = arith.constant 3.200000e+01 : f32
    %185 = vector.broadcast %cst_56 : f32 to vector<2x8x1xf32>
    %186 = arith.divf %184, %185 : vector<2x8x1xf32>
    %187 = vector.broadcast %186 : vector<2x8x1xf32> to vector<2x8x32xf32>
    %188 = arith.subf %152, %187 : vector<2x8x32xf32>
    %189 = arith.mulf %188, %188 : vector<2x8x32xf32>
    %cst_57 = arith.constant dense<0.000000e+00> : vector<2x8xf32>
    %190 = vector.multi_reduction <add>, %189, %cst_57 [2] : vector<2x8x32xf32> to vector<2x8xf32>
    %191 = vector.shape_cast %190 : vector<2x8xf32> to vector<2x8x1xf32>
    %cst_58 = arith.constant 3.200000e+01 : f32
    %192 = vector.broadcast %cst_58 : f32 to vector<2x8x1xf32>
    %193 = arith.divf %191, %192 : vector<2x8x1xf32>
    %cst_59 = arith.constant 9.99999974E-6 : f32
    %194 = vector.broadcast %cst_59 : f32 to vector<2x8x1xf32>
    %195 = arith.addf %193, %194 : vector<2x8x1xf32>
    %196 = math.rsqrt %195 : vector<2x8x1xf32>
    %197 = vector.broadcast %196 : vector<2x8x1xf32> to vector<2x8x32xf32>
    %198 = arith.mulf %188, %197 : vector<2x8x32xf32>
    %199 = vector.extract_strided_slice %158 {offsets = [0, 0], sizes = [32, 32], strides = [1, 1]} : vector<32x192xf32> to vector<32x32xf32>
    %200 = vector.shape_cast %174 : vector<2x4x32xf32> to vector<8x32xf32>
    %cst_60 = arith.constant dense<0.000000e+00> : vector<8x32xf32>
    %201 = tpu.matmul %200, %199, %cst_60 {dimension_numbers = #tpu.dot_dimension_numbers<[1], [0], [0], [1], [0, 0, 1, 1], [], []>} : vector<8x32xf32>, vector<32x32xf32>, vector<8x32xf32> -> vector<8x32xf32>
    %202 = vector.shape_cast %201 : vector<8x32xf32> to vector<2x4x32xf32>
    %203 = vector.extract_strided_slice %156 {offsets = [2, 0], sizes = [1, 32], strides = [1, 1]} : vector<9x32xf32> to vector<1x32xf32>
    %204 = vector.shape_cast %203 : vector<1x32xf32> to vector<1x1x32xf32>
    %205 = vector.broadcast %204 : vector<1x1x32xf32> to vector<2x4x32xf32>
    %206 = arith.addf %202, %205 : vector<2x4x32xf32>
    %207 = vector.extract_strided_slice %158 {offsets = [0, 32], sizes = [32, 64], strides = [1, 1]} : vector<32x192xf32> to vector<32x64xf32>
    %208 = vector.shape_cast %198 : vector<2x8x32xf32> to vector<16x32xf32>
    %cst_61 = arith.constant dense<0.000000e+00> : vector<16x64xf32>
    %209 = tpu.matmul %208, %207, %cst_61 {dimension_numbers = #tpu.dot_dimension_numbers<[1], [0], [0], [1], [0, 0, 1, 1], [], []>} : vector<16x32xf32>, vector<32x64xf32>, vector<16x64xf32> -> vector<16x64xf32>
    %210 = vector.shape_cast %209 : vector<16x64xf32> to vector<2x8x64xf32>
    %211 = vector.extract_strided_slice %210 {offsets = [0, 0, 0], sizes = [2, 8, 32], strides = [1, 1, 1]} : vector<2x8x64xf32> to vector<2x8x32xf32>
    %212 = vector.extract_strided_slice %156 {offsets = [3, 0], sizes = [1, 32], strides = [1, 1]} : vector<9x32xf32> to vector<1x32xf32>
    %213 = vector.shape_cast %212 : vector<1x32xf32> to vector<1x1x32xf32>
    %214 = vector.broadcast %213 : vector<1x1x32xf32> to vector<2x8x32xf32>
    %215 = arith.addf %211, %214 : vector<2x8x32xf32>
    %216 = vector.extract_strided_slice %210 {offsets = [0, 0, 32], sizes = [2, 8, 32], strides = [1, 1, 1]} : vector<2x8x64xf32> to vector<2x8x32xf32>
    %217 = vector.extract_strided_slice %156 {offsets = [4, 0], sizes = [1, 32], strides = [1, 1]} : vector<9x32xf32> to vector<1x32xf32>
    %218 = vector.shape_cast %217 : vector<1x32xf32> to vector<1x1x32xf32>
    %219 = vector.broadcast %218 : vector<1x1x32xf32> to vector<2x8x32xf32>
    %220 = arith.addf %216, %219 : vector<2x8x32xf32>
    %221 = vector.shape_cast %206 : vector<2x4x32xf32> to vector<2x4x1x32xf32>
    %222 = vector.shape_cast %215 : vector<2x8x32xf32> to vector<2x1x8x32xf32>
    %223 = vector.broadcast %221 : vector<2x4x1x32xf32> to vector<2x4x8x32xf32>
    %224 = vector.broadcast %222 : vector<2x1x8x32xf32> to vector<2x4x8x32xf32>
    %225 = arith.mulf %223, %224 : vector<2x4x8x32xf32>
    %226 = vector.shape_cast %225 : vector<2x4x8x32xf32> to vector<64x32xf32>
    %227 = vector.extract_strided_slice %158 {offsets = [0, 160], sizes = [32, 32], strides = [1, 1]} : vector<32x192xf32> to vector<32x32xf32>
    %cst_62 = arith.constant dense<0.000000e+00> : vector<64x32xf32>
    %228 = tpu.matmul %226, %227, %cst_62 {dimension_numbers = #tpu.dot_dimension_numbers<[1], [0], [0], [1], [0, 0, 1, 1], [], []>} : vector<64x32xf32>, vector<32x32xf32>, vector<64x32xf32> -> vector<64x32xf32>
    %229 = vector.shape_cast %228 : vector<64x32xf32> to vector<2x4x8x32xf32>
    %cst_63 = arith.constant dense<0xFF800000> : vector<2x4x32xf32>
    %230 = vector.multi_reduction <maximumf>, %229, %cst_63 [2] : vector<2x4x8x32xf32> to vector<2x4x32xf32>
    %231 = vector.shape_cast %230 : vector<2x4x32xf32> to vector<2x4x1x32xf32>
    %232 = vector.broadcast %231 : vector<2x4x1x32xf32> to vector<2x4x8x32xf32>
    %233 = arith.subf %229, %232 : vector<2x4x8x32xf32>
    %234 = math.exp %233 : vector<2x4x8x32xf32>
    %cst_64 = arith.constant dense<0.000000e+00> : vector<2x4x32xf32>
    %235 = vector.multi_reduction <add>, %234, %cst_64 [2] : vector<2x4x8x32xf32> to vector<2x4x32xf32>
    %236 = vector.shape_cast %235 : vector<2x4x32xf32> to vector<2x4x1x32xf32>
    %237 = vector.broadcast %236 : vector<2x4x1x32xf32> to vector<2x4x8x32xf32>
    %238 = arith.divf %234, %237 : vector<2x4x8x32xf32>
    %239 = vector.shape_cast %220 : vector<2x8x32xf32> to vector<2x1x8x32xf32>
    %240 = vector.broadcast %239 : vector<2x1x8x32xf32> to vector<2x4x8x32xf32>
    %241 = arith.mulf %238, %240 : vector<2x4x8x32xf32>
    %cst_65 = arith.constant dense<0.000000e+00> : vector<2x4x32xf32>
    %242 = vector.multi_reduction <add>, %241, %cst_65 [2] : vector<2x4x8x32xf32> to vector<2x4x32xf32>
    %243 = vector.extract_strided_slice %158 {offsets = [0, 96], sizes = [32, 32], strides = [1, 1]} : vector<32x192xf32> to vector<32x32xf32>
    %244 = vector.shape_cast %242 : vector<2x4x32xf32> to vector<8x32xf32>
    %cst_66 = arith.constant dense<0.000000e+00> : vector<8x32xf32>
    %245 = tpu.matmul %244, %243, %cst_66 {dimension_numbers = #tpu.dot_dimension_numbers<[1], [0], [0], [1], [0, 0, 1, 1], [], []>} : vector<8x32xf32>, vector<32x32xf32>, vector<8x32xf32> -> vector<8x32xf32>
    %246 = vector.shape_cast %245 : vector<8x32xf32> to vector<2x4x32xf32>
    %247 = vector.extract_strided_slice %156 {offsets = [7, 0], sizes = [1, 32], strides = [1, 1]} : vector<9x32xf32> to vector<1x32xf32>
    %248 = vector.shape_cast %247 : vector<1x32xf32> to vector<1x1x32xf32>
    %249 = vector.broadcast %248 : vector<1x1x32xf32> to vector<2x4x32xf32>
    %250 = arith.addf %246, %249 : vector<2x4x32xf32>
    %cst_67 = arith.constant dense<0.000000e+00> : vector<2x4xf32>
    %251 = vector.multi_reduction <add>, %250, %cst_67 [2] : vector<2x4x32xf32> to vector<2x4xf32>
    %252 = vector.shape_cast %251 : vector<2x4xf32> to vector<2x4x1xf32>
    %cst_68 = arith.constant 3.200000e+01 : f32
    %253 = vector.broadcast %cst_68 : f32 to vector<2x4x1xf32>
    %254 = arith.divf %252, %253 : vector<2x4x1xf32>
    %255 = vector.broadcast %254 : vector<2x4x1xf32> to vector<2x4x32xf32>
    %256 = arith.subf %250, %255 : vector<2x4x32xf32>
    %257 = arith.mulf %256, %256 : vector<2x4x32xf32>
    %cst_69 = arith.constant dense<0.000000e+00> : vector<2x4xf32>
    %258 = vector.multi_reduction <add>, %257, %cst_69 [2] : vector<2x4x32xf32> to vector<2x4xf32>
    %259 = vector.shape_cast %258 : vector<2x4xf32> to vector<2x4x1xf32>
    %cst_70 = arith.constant 3.200000e+01 : f32
    %260 = vector.broadcast %cst_70 : f32 to vector<2x4x1xf32>
    %261 = arith.divf %259, %260 : vector<2x4x1xf32>
    %cst_71 = arith.constant 9.99999974E-6 : f32
    %262 = vector.broadcast %cst_71 : f32 to vector<2x4x1xf32>
    %263 = arith.addf %261, %262 : vector<2x4x1xf32>
    %264 = math.rsqrt %263 : vector<2x4x1xf32>
    %265 = vector.broadcast %264 : vector<2x4x1xf32> to vector<2x4x32xf32>
    %266 = arith.mulf %256, %265 : vector<2x4x32xf32>
    %267 = vector.extract_strided_slice %156 {offsets = [5, 0], sizes = [1, 32], strides = [1, 1]} : vector<9x32xf32> to vector<1x32xf32>
    %268 = vector.shape_cast %267 : vector<1x32xf32> to vector<1x1x32xf32>
    %269 = vector.broadcast %268 : vector<1x1x32xf32> to vector<2x4x32xf32>
    %270 = arith.mulf %266, %269 : vector<2x4x32xf32>
    %271 = vector.extract_strided_slice %156 {offsets = [6, 0], sizes = [1, 32], strides = [1, 1]} : vector<9x32xf32> to vector<1x32xf32>
    %272 = vector.shape_cast %271 : vector<1x32xf32> to vector<1x1x32xf32>
    %273 = vector.broadcast %272 : vector<1x1x32xf32> to vector<2x4x32xf32>
    %274 = arith.addf %270, %273 : vector<2x4x32xf32>
    %275 = arith.addf %182, %274 : vector<2x4x32xf32>
    %276 = vector.extract_strided_slice %158 {offsets = [0, 128], sizes = [32, 32], strides = [1, 1]} : vector<32x192xf32> to vector<32x32xf32>
    %277 = vector.shape_cast %275 : vector<2x4x32xf32> to vector<8x32xf32>
    %cst_72 = arith.constant dense<0.000000e+00> : vector<8x32xf32>
    %278 = tpu.matmul %277, %276, %cst_72 {dimension_numbers = #tpu.dot_dimension_numbers<[1], [0], [0], [1], [0, 0, 1, 1], [], []>} : vector<8x32xf32>, vector<32x32xf32>, vector<8x32xf32> -> vector<8x32xf32>
    %279 = vector.shape_cast %278 : vector<8x32xf32> to vector<2x4x32xf32>
    %280 = vector.extract_strided_slice %156 {offsets = [8, 0], sizes = [1, 32], strides = [1, 1]} : vector<9x32xf32> to vector<1x32xf32>
    %281 = vector.shape_cast %280 : vector<1x32xf32> to vector<1x1x32xf32>
    %282 = vector.broadcast %281 : vector<1x1x32xf32> to vector<2x4x32xf32>
    %283 = arith.addf %279, %282 : vector<2x4x32xf32>
    %cst_73 = arith.constant 5.000000e-01 : f32
    %284 = vector.broadcast %cst_73 : f32 to vector<2x4x32xf32>
    %285 = arith.mulf %284, %283 : vector<2x4x32xf32>
    %cst_74 = arith.constant 0.707106769 : f32
    %286 = vector.broadcast %cst_74 : f32 to vector<2x4x32xf32>
    %287 = arith.mulf %283, %286 : vector<2x4x32xf32>
    %cst_75 = arith.constant 0.000000e+00 : f32
    %288 = vector.broadcast %cst_75 : f32 to vector<2x4x32xf32>
    %289 = arith.cmpf oge, %287, %288 : vector<2x4x32xf32>
    %cst_76 = arith.constant 1.000000e+00 : f32
    %cst_77 = arith.constant -1.000000e+00 : f32
    %290 = vector.broadcast %cst_76 : f32 to vector<2x4x32xf32>
    %291 = vector.broadcast %cst_77 : f32 to vector<2x4x32xf32>
    %292 = arith.select %289, %290, %291 : vector<2x4x32xi1>, vector<2x4x32xf32>
    %293 = math.absf %287 : vector<2x4x32xf32>
    %cst_78 = arith.constant 0.327591091 : f32
    %294 = vector.broadcast %cst_78 : f32 to vector<2x4x32xf32>
    %295 = arith.mulf %294, %293 : vector<2x4x32xf32>
    %cst_79 = arith.constant 1.000000e+00 : f32
    %296 = vector.broadcast %cst_79 : f32 to vector<2x4x32xf32>
    %297 = arith.addf %296, %295 : vector<2x4x32xf32>
    %cst_80 = arith.constant 1.000000e+00 : f32
    %298 = vector.broadcast %cst_80 : f32 to vector<2x4x32xf32>
    %299 = arith.divf %298, %297 : vector<2x4x32xf32>
    %cst_81 = arith.constant 1.06140542 : f32
    %300 = vector.broadcast %cst_81 : f32 to vector<2x4x32xf32>
    %301 = arith.mulf %300, %299 : vector<2x4x32xf32>
    %cst_82 = arith.constant -1.45315206 : f32
    %302 = vector.broadcast %cst_82 : f32 to vector<2x4x32xf32>
    %303 = arith.addf %301, %302 : vector<2x4x32xf32>
    %304 = arith.mulf %303, %299 : vector<2x4x32xf32>
    %cst_83 = arith.constant 1.42141378 : f32
    %305 = vector.broadcast %cst_83 : f32 to vector<2x4x32xf32>
    %306 = arith.addf %304, %305 : vector<2x4x32xf32>
    %307 = arith.mulf %306, %299 : vector<2x4x32xf32>
    %cst_84 = arith.constant -0.284496725 : f32
    %308 = vector.broadcast %cst_84 : f32 to vector<2x4x32xf32>
    %309 = arith.addf %307, %308 : vector<2x4x32xf32>
    %310 = arith.mulf %309, %299 : vector<2x4x32xf32>
    %cst_85 = arith.constant 0.254829586 : f32
    %311 = vector.broadcast %cst_85 : f32 to vector<2x4x32xf32>
    %312 = arith.addf %310, %311 : vector<2x4x32xf32>
    %313 = arith.mulf %312, %299 : vector<2x4x32xf32>
    %cst_86 = arith.constant 0.000000e+00 : f32
    %314 = vector.broadcast %cst_86 : f32 to vector<2x4x32xf32>
    %315 = arith.subf %314, %293 : vector<2x4x32xf32>
    %316 = arith.mulf %315, %293 : vector<2x4x32xf32>
    %317 = math.exp %316 : vector<2x4x32xf32>
    %318 = arith.mulf %313, %317 : vector<2x4x32xf32>
    %cst_87 = arith.constant 1.000000e+00 : f32
    %319 = vector.broadcast %cst_87 : f32 to vector<2x4x32xf32>
    %320 = arith.subf %319, %318 : vector<2x4x32xf32>
    %321 = arith.mulf %292, %320 : vector<2x4x32xf32>
    %cst_88 = arith.constant 1.000000e+00 : f32
    %322 = vector.broadcast %cst_88 : f32 to vector<2x4x32xf32>
    %323 = arith.addf %322, %321 : vector<2x4x32xf32>
    %324 = arith.mulf %285, %323 : vector<2x4x32xf32>
    %325 = arith.addf %275, %324 : vector<2x4x32xf32>
    %c0_89 = arith.constant 0 : index
    %c0_90 = arith.constant 0 : index
    %c0_91 = arith.constant 0 : index
    %326 = vector.load %arg4[%c0_89, %c0_90, %c0_91] : memref<2x12x32xf32, #tpu.memory_space<vmem>>, vector<2x4x32xf32>
    tpu.vector_store %arg4[%c0_89, %c0_90, %c0_91], %325 {strides = array<i32>} : memref<2x12x32xf32, #tpu.memory_space<vmem>>, vector<2x4x32xf32>,
    return
  }
}

</mosaic_0001>

<llo_original>
// kernel: tpu_custom_call.1
$region0: #{tpu_custom_call.1}
  #allocation0 [shape = 'u32[]', space=smem, size = 0x4, offset = 0x4, fixed_abs, tag = 'smem constant byte address 0x4 - core index']
  #allocation1 [shape = 'u32[72,128]{1,0:T(1,128)}', space=vmem, size = 0x9000, scoped, tag = 'internal scratch']
  %s0 = inlined_call_operand.vmem [shape: f32[2,4,32], index: 0, kind: input, shape index: {}]
  %s1 = inlined_call_operand.vmem [shape: f32[2,8,32], index: 1, kind: input, shape index: {}]
  %s2 = inlined_call_operand.vmem [shape: f32[2,9,32], index: 2, kind: input, shape index: {}]
  %s3 = inlined_call_operand.hbm [shape: f32[2,32,192], index: 3, kind: input, shape index: {}]
  %s4 = inlined_call_operand.vmem [shape: f32[2,12,32], index: 4, kind: output, shape index: {}]
  %s5 = sld [smem:[#allocation0]]
  $region30: #{tpu_custom_call.1} parent=0
    _
  %s7 = ssub.s32 1, %s5
  %s8 = scalar_select 0, %s7, %s5
  $region1: #{tpu_custom_call.1} parent=0
    #allocation2 [shape = 'u8[65536]{0}', space=vmem, size = 0x10000, scoped, tag = 'input window, operand 3, single buffered']
    #allocation3 [shape = 's32[1]{0}', space=sflag, size = 0x4, scoped, tag = 'scoped memory for tpu_custom_call.1']
    %9 = vsyncpa [#allocation3], 0
    // Predicated region
    $region2: #{tpu_custom_call.1} parent=1 // pred_check
      _
    $region3: #{tpu_custom_call.1} parent=1 // pred_check_branch
      %11 = sbr.rel (0) target = $region5
    $region4: #{tpu_custom_call.1} parent=1 // pred_region
      _
    $region5: #{tpu_custom_call.1} parent=1 // pred_fallthru
      _
    // Predicated region
    $region6: #{tpu_custom_call.1} parent=1 // pred_check
      _
    $region7: #{tpu_custom_call.1} parent=1 // pred_check_branch
      %13 = sbr.rel (0) target = $region9
    $region8: #{tpu_custom_call.1} parent=1 // pred_region
      _
    $region9: #{tpu_custom_call.1} parent=1 // pred_fallthru
      _
    // Predicated region
    $region10: #{tpu_custom_call.1} parent=1 // pred_check
      _
    $region11: #{tpu_custom_call.1} parent=1 // pred_check_branch
      %15 = sbr.rel (0) target = $region13
    $region12: #{tpu_custom_call.1} parent=1 // pred_region
      _
    $region13: #{tpu_custom_call.1} parent=1 // pred_fallthru
      _
    // Predicated region
    $region14: #{tpu_custom_call.1} parent=1 // pred_check
      _
    $region15: #{tpu_custom_call.1} parent=1 // pred_check_branch
      %17 = sbr.rel (0) target = $region17
    $region16: #{tpu_custom_call.1} parent=1 // pred_region
      %19 = vsyncadd [#allocation3], 0
      %s20 = sshll.u32 %s3, 4
      %s21 = int_to_ptr.hbm [resolvable:$true] %s20
      %s22 = sshll.u32 [#allocation2], 4
      %s23 = int_to_ptr.vmem [resolvable:$true] %s22
      %28 = dma.hbm_to_vmem [thread:$0]  %s21, 2048, %s23, [#allocation3], 256, 256, 16
    $region17: #{tpu_custom_call.1} parent=1 // pred_fallthru
      _
    // Predicated region
    $region18: #{tpu_custom_call.1} parent=1 // pred_check
      _
    $region19: #{tpu_custom_call.1} parent=1 // pred_check_branch
      %30 = sbr.rel (0) target = $region21
    $region20: #{tpu_custom_call.1} parent=1 // pred_region
      %32 = dma.done [#allocation3], 2048
    $region21: #{tpu_custom_call.1} parent=1 // pred_fallthru
      _
    %v33 = vld [vmem:[%s1] sm:$0xff]
    %v34 = vld [vmem:[%s1 + $0x8] sm:$0xff]
    %v35 = vld [vmem:[%s2] sm:$0xff]
    %v36 = vld [vmem:[%s2 + $0x8] sm:$0x1]
    %v37 = vld [vmem:[#allocation2] sm:$0xff]
    %v38 = vld [vmem:[#allocation2 + $0x8] sm:$0xff]
    %v39 = vld [vmem:[#allocation2 + $0x10] sm:$0xff]
    %v40 = vld [vmem:[#allocation2 + $0x18] sm:$0xff]
    %v41 = vld [vmem:[#allocation2 + $0x20] sm:$0xff]
    %v42 = vld [vmem:[#allocation2 + $0x28] sm:$0xff]
    %v43 = vld [vmem:[#allocation2 + $0x30] sm:$0xff]
    %v44 = vld [vmem:[#allocation2 + $0x38] sm:$0xff]
    %vm45 = vcmask 261120
    %v46 = vsel %vm45, %v33, 0.0
    %47 = vadd.xlane.f32.xlu0 %v46
    %v48 = vpop.xlane.xlu0 %47
    %v49 = vsel %vm45, %v34, 0.0
    %50 = vadd.xlane.f32.xlu0 %v49
    %v51 = vpop.xlane.xlu0 %50
    %v52 = vrcp.pop 32.0
    %v53 = vmul.f32 32.0, %v52
    %v54 = vsub.f32 1.0, %v53
    %v55 = vmul.f32 %v52, %v54
    %v56 = vadd.f32 %v52, %v55
    %vm57 = vweird.f32 %v52
    %v58 = vsel %vm57, %v52, %v56
    %v59 = vmul.f32 %v48, %v58
    %v60 = vmul.f32 %v51, %v58
    %v61 = vsub.f32 %v33, %v59
    %v62 = vsub.f32 %v34, %v60
    %v63 = vmul.f32 %v61, %v61
    %v64 = vmul.f32 %v62, %v62
    %v65 = vsel %vm45, %v63, 0.0
    %66 = vadd.xlane.f32.xlu0 %v65
    %v67 = vpop.xlane.xlu0 %66
    %v68 = vsel %vm45, %v64, 0.0
    %69 = vadd.xlane.f32.xlu0 %v68
    %v70 = vpop.xlane.xlu0 %69
    %v71 = vmul.f32 %v67, %v58
    %v72 = vmul.f32 %v70, %v58
    %v73 = vadd.f32 %v71, 1e-05
    %v74 = vadd.f32 %v72, 1e-05
    %v75 = vrsqrt.pop %v73
    %v76 = vmul.f32 %v75, %v73
    %v77 = vmul.f32 %v76, %v75
    %v78 = vmul.f32 0.5, %v77
    %v79 = vsub.f32 1.5, %v78
    %v80 = vmul.f32 %v75, %v79
    %vm81 = vweird.f32 %v73
    %vm82 = vweird.f32 %v75
    %vm83 = vmor %vm81, %vm82
    %v84 = vsel %vm83, %v75, %v80
    %v85 = vrsqrt.pop %v74
    %v86 = vmul.f32 %v85, %v74
    %v87 = vmul.f32 %v86, %v85
    %v88 = vmul.f32 0.5, %v87
    %v89 = vsub.f32 1.5, %v88
    %v90 = vmul.f32 %v85, %v89
    %vm91 = vweird.f32 %v74
    %vm92 = vweird.f32 %v85
    %vm93 = vmor %vm91, %vm92
    %v94 = vsel %vm93, %v85, %v90
    %v95 = vmul.f32 %v61, %v84
    %v96 = vmul.f32 %v62, %v94
    %v97 = vperm.slane %v35, 0
    %v98 = vmul.f32 %v95, %v97
    %v99 = vmul.f32 %v96, %v97
    %v100 = vperm.slane %v35, 1
    %v101 = vadd.f32 %v98, %v100
    %v102 = vadd.f32 %v99, %v100
    %v104 = vsel %vm45, %v95, 0
    %v107 = vsel %vm45, %v96, 0
    %109 = vmatpush.msra.mxu0 0.0
    %110 = vmatpush.msra.mxu0 0.0
    %111 = vmatpush.msra.mxu0 0.0
    %112 = vmatpush.msra.mxu0 0.0
    %113 = vmatpush.msra.mxu0 0.0
    %114 = vmatpush.msra.mxu0 0.0
    %115 = vmatpush.msra.mxu0 0.0
    %116 = vmatpush.msra.mxu0 0.0
    %117 = vmatpush.msra.mxu0 0.0
    %118 = vmatpush.msra.mxu0 0.0
    %119 = vmatpush.msra.mxu0 0.0
    %120 = vmatpush.msra.mxu0 0.0
    %121 = vmatpush.msra.mxu0 %v43
    %122 = vmatpush.msra.mxu0 %v41
    %123 = vmatpush.msra.mxu0 %v39
    %124 = vmatpush.msra.mxu0 %v37
    %125 = vmatmul.f32.gmra.mxu0 %v104
    %v126 = vpop.f32.mrf.mxu0
    %v127 = vadd.f32 0.0, %v126
    %128 = vmatmul.f32.gmra.mxu0 %v107
    %v129 = vpop.f32.mrf.mxu0
    %v130 = vadd.f32 0.0, %v129
    %131 = vdwg.mxu0
    %v132 = vperm.slane %v35, 2
    %v133 = vadd.f32 %v127, %v132
    %v134 = vadd.f32 %v130, %v132
    %v135 = vperm.slane %v35, 3
    %137 = vrot.lane.b32.xlu0 %v135, 32
    %v138 = vpop.permute.xlu0 %137
    %v140 = vadd.f32 %v127, %v138
    %v141 = vadd.f32 %v130, %v138
    %v142 = vperm.slane %v35, 4
    %144 = vrot.lane.b32.xlu0 %v142, 64
    %v145 = vpop.permute.xlu0 %144
    %v147 = vadd.f32 %v127, %v145
    %v148 = vadd.f32 %v130, %v145
    %v151 = vrot.slane %v133, 1
    %v152 = vrot.slane %v133, 2
    %v153 = vrot.slane %v133, 3
    %v154 = vrot.slane %v133, 4
    %v155 = vrot.slane %v133, 5
    %v156 = vrot.slane %v133, 6
    %v157 = vrot.slane %v133, 7
    %v158 = vrot.slane %v134, 1
    %v159 = vrot.slane %v134, 2
    %v160 = vrot.slane %v134, 3
    %v161 = vrot.slane %v134, 4
    %v162 = vrot.slane %v134, 5
    %v163 = vrot.slane %v134, 6
    %v164 = vrot.slane %v134, 7
    %v165 = vperm.slane %v133, 0
    %v166 = vperm.slane %v151, 0
    %v167 = vperm.slane %v152, 0
    %v168 = vperm.slane %v153, 0
    %v169 = vperm.slane %v154, 0
    %v170 = vperm.slane %v155, 0
    %v171 = vperm.slane %v156, 0
    %v172 = vperm.slane %v157, 0
    %v173 = vperm.slane %v134, 0
    %v174 = vperm.slane %v158, 0
    %v175 = vperm.slane %v159, 0
    %v176 = vperm.slane %v160, 0
    %v177 = vperm.slane %v161, 0
    %v178 = vperm.slane %v162, 0
    %v179 = vperm.slane %v163, 0
    %v180 = vperm.slane %v164, 0
    %199 = vrot.lane.b32.xlu0 %v140, 96
    %v200 = vpop.permute.xlu0 %199
    %201 = vrot.lane.b32.xlu0 %v141, 96
    %v202 = vpop.permute.xlu0 %201
    %v205 = vmul.f32 %v165, %v200
    %v206 = vmul.f32 %v166, %v200
    %v207 = vmul.f32 %v167, %v200
    %v208 = vmul.f32 %v168, %v200
    %v209 = vmul.f32 %v169, %v200
    %v210 = vmul.f32 %v170, %v200
    %v211 = vmul.f32 %v171, %v200
    %v212 = vmul.f32 %v172, %v200
    %v213 = vmul.f32 %v173, %v202
    %v214 = vmul.f32 %v174, %v202
    %v215 = vmul.f32 %v175, %v202
    %v216 = vmul.f32 %v176, %v202
    %v217 = vmul.f32 %v177, %v202
    %v218 = vmul.f32 %v178, %v202
    %v219 = vmul.f32 %v179, %v202
    %v220 = vmul.f32 %v180, %v202
    %225 = vrot.lane.b32.xlu0 %v38, 96
    %v226 = vpop.permute.xlu0 %225
    %227 = vrot.lane.b32.xlu0 %v40, 96
    %v228 = vpop.permute.xlu0 %227
    %229 = vrot.lane.b32.xlu0 %v42, 96
    %v230 = vpop.permute.xlu0 %229
    %231 = vrot.lane.b32.xlu0 %v44, 96
    %v232 = vpop.permute.xlu0 %231
    %v238 = vsel %vm45, %v205, 0
    %v241 = vsel %vm45, %v206, 0
    %v244 = vsel %vm45, %v207, 0
    %v247 = vsel %vm45, %v208, 0
    %v250 = vsel %vm45, %v209, 0
    %v253 = vsel %vm45, %v210, 0
    %v256 = vsel %vm45, %v211, 0
    %v259 = vsel %vm45, %v212, 0
    %v262 = vsel %vm45, %v213, 0
    %v265 = vsel %vm45, %v214, 0
    %v268 = vsel %vm45, %v215, 0
    %v271 = vsel %vm45, %v216, 0
    %v274 = vsel %vm45, %v217, 0
    %v277 = vsel %vm45, %v218, 0
    %v280 = vsel %vm45, %v219, 0
    %v283 = vsel %vm45, %v220, 0
    %285 = vmatpush.msra.mxu0 0.0
    %286 = vmatpush.msra.mxu0 0.0
    %287 = vmatpush.msra.mxu0 0.0
    %288 = vmatpush.msra.mxu0 0.0
    %289 = vmatpush.msra.mxu0 0.0
    %290 = vmatpush.msra.mxu0 0.0
    %291 = vmatpush.msra.mxu0 0.0
    %292 = vmatpush.msra.mxu0 0.0
    %293 = vmatpush.msra.mxu0 0.0
    %294 = vmatpush.msra.mxu0 0.0
    %295 = vmatpush.msra.mxu0 0.0
    %296 = vmatpush.msra.mxu0 0.0
    %297 = vmatpush.msra.mxu0 %v232
    %298 = vmatpush.msra.mxu0 %v230
    %299 = vmatpush.msra.mxu0 %v228
    %300 = vmatpush.msra.mxu0 %v226
    %301 = vmatmul.f32.gmra.mxu0 %v238
    %v302 = vpop.f32.mrf.mxu0
    %v303 = vadd.f32 0.0, %v302
    %304 = vmatmul.f32.gmra.mxu0 %v241
    %v305 = vpop.f32.mrf.mxu0
    %v306 = vadd.f32 0.0, %v305
    %307 = vmatmul.f32.gmra.mxu0 %v244
    %v308 = vpop.f32.mrf.mxu0
    %v309 = vadd.f32 0.0, %v308
    %310 = vmatmul.f32.gmra.mxu0 %v247
    %v311 = vpop.f32.mrf.mxu0
    %v312 = vadd.f32 0.0, %v311
    %313 = vmatmul.f32.gmra.mxu0 %v250
    %v314 = vpop.f32.mrf.mxu0
    %v315 = vadd.f32 0.0, %v314
    %316 = vmatmul.f32.gmra.mxu0 %v253
    %v317 = vpop.f32.mrf.mxu0
    %v318 = vadd.f32 0.0, %v317
    %319 = vmatmul.f32.gmra.mxu0 %v256
    %v320 = vpop.f32.mrf.mxu0
    %v321 = vadd.f32 0.0, %v320
    %322 = vmatmul.f32.gmra.mxu0 %v259
    %v323 = vpop.f32.mrf.mxu0
    %v324 = vadd.f32 0.0, %v323
    %325 = vmatmul.f32.gmra.mxu0 %v262
    %v326 = vpop.f32.mrf.mxu0
    %v327 = vadd.f32 0.0, %v326
    %328 = vmatmul.f32.gmra.mxu0 %v265
    %v329 = vpop.f32.mrf.mxu0
    %v330 = vadd.f32 0.0, %v329
    %331 = vmatmul.f32.gmra.mxu0 %v268
    %v332 = vpop.f32.mrf.mxu0
    %v333 = vadd.f32 0.0, %v332
    %334 = vmatmul.f32.gmra.mxu0 %v271
    %v335 = vpop.f32.mrf.mxu0
    %v336 = vadd.f32 0.0, %v335
    %337 = vmatmul.f32.gmra.mxu0 %v274
    %v338 = vpop.f32.mrf.mxu0
    %v339 = vadd.f32 0.0, %v338
    %340 = vmatmul.f32.gmra.mxu0 %v277
    %v341 = vpop.f32.mrf.mxu0
    %v342 = vadd.f32 0.0, %v341
    %343 = vmatmul.f32.gmra.mxu0 %v280
    %v344 = vpop.f32.mrf.mxu0
    %v345 = vadd.f32 0.0, %v344
    %346 = vmatmul.f32.gmra.mxu0 %v283
    %v347 = vpop.f32.mrf.mxu0
    %v348 = vadd.f32 0.0, %v347
    %349 = vdwg.mxu0
    %v350 = vsel %vm45, %v303, -inf
    %v351 = vrot.slane %v350, 4
    %v352 = vmax.f32 %v350, %v351
    %v353 = vrot.slane %v352, 2
    %v354 = vmax.f32 %v352, %v353
    %v355 = vrot.slane %v354, 1
    %v356 = vmax.f32 %v354, %v355
    %v357 = vsel %vm45, %v306, -inf
    %v358 = vrot.slane %v357, 4
    %v359 = vmax.f32 %v357, %v358
    %v360 = vrot.slane %v359, 2
    %v361 = vmax.f32 %v359, %v360
    %v362 = vrot.slane %v361, 1
    %v363 = vmax.f32 %v361, %v362
    %v364 = vsel %vm45, %v309, -inf
    %v365 = vrot.slane %v364, 4
    %v366 = vmax.f32 %v364, %v365
    %v367 = vrot.slane %v366, 2
    %v368 = vmax.f32 %v366, %v367
    %v369 = vrot.slane %v368, 1
    %v370 = vmax.f32 %v368, %v369
    %v371 = vsel %vm45, %v312, -inf
    %v372 = vrot.slane %v371, 4
    %v373 = vmax.f32 %v371, %v372
    %v374 = vrot.slane %v373, 2
    %v375 = vmax.f32 %v373, %v374
    %v376 = vrot.slane %v375, 1
    %v377 = vmax.f32 %v375, %v376
    %v378 = vsel %vm45, %v315, -inf
    %v379 = vrot.slane %v378, 4
    %v380 = vmax.f32 %v378, %v379
    %v381 = vrot.slane %v380, 2
    %v382 = vmax.f32 %v380, %v381
    %v383 = vrot.slane %v382, 1
    %v384 = vmax.f32 %v382, %v383
    %v385 = vsel %vm45, %v318, -inf
    %v386 = vrot.slane %v385, 4
    %v387 = vmax.f32 %v385, %v386
    %v388 = vrot.slane %v387, 2
    %v389 = vmax.f32 %v387, %v388
    %v390 = vrot.slane %v389, 1
    %v391 = vmax.f32 %v389, %v390
    %v392 = vsel %vm45, %v321, -inf
    %v393 = vrot.slane %v392, 4
    %v394 = vmax.f32 %v392, %v393
    %v395 = vrot.slane %v394, 2
    %v396 = vmax.f32 %v394, %v395
    %v397 = vrot.slane %v396, 1
    %v398 = vmax.f32 %v396, %v397
    %v399 = vsel %vm45, %v324, -inf
    %v400 = vrot.slane %v399, 4
    %v401 = vmax.f32 %v399, %v400
    %v402 = vrot.slane %v401, 2
    %v403 = vmax.f32 %v401, %v402
    %v404 = vrot.slane %v403, 1
    %v405 = vmax.f32 %v403, %v404
    %v406 = vsel %vm45, %v327, -inf
    %v407 = vrot.slane %v406, 4
    %v408 = vmax.f32 %v406, %v407
    %v409 = vrot.slane %v408, 2
    %v410 = vmax.f32 %v408, %v409
    %v411 = vrot.slane %v410, 1
    %v412 = vmax.f32 %v410, %v411
    %v413 = vsel %vm45, %v330, -inf
    %v414 = vrot.slane %v413, 4
    %v415 = vmax.f32 %v413, %v414
    %v416 = vrot.slane %v415, 2
    %v417 = vmax.f32 %v415, %v416
    %v418 = vrot.slane %v417, 1
    %v419 = vmax.f32 %v417, %v418
    %v420 = vsel %vm45, %v333, -inf
    %v421 = vrot.slane %v420, 4
    %v422 = vmax.f32 %v420, %v421
    %v423 = vrot.slane %v422, 2
    %v424 = vmax.f32 %v422, %v423
    %v425 = vrot.slane %v424, 1
    %v426 = vmax.f32 %v424, %v425
    %v427 = vsel %vm45, %v336, -inf
    %v428 = vrot.slane %v427, 4
    %v429 = vmax.f32 %v427, %v428
    %v430 = vrot.slane %v429, 2
    %v431 = vmax.f32 %v429, %v430
    %v432 = vrot.slane %v431, 1
    %v433 = vmax.f32 %v431, %v432
    %v434 = vsel %vm45, %v339, -inf
    %v435 = vrot.slane %v434, 4
    %v436 = vmax.f32 %v434, %v435
    %v437 = vrot.slane %v436, 2
    %v438 = vmax.f32 %v436, %v437
    %v439 = vrot.slane %v438, 1
    %v440 = vmax.f32 %v438, %v439
    %v441 = vsel %vm45, %v342, -inf
    %v442 = vrot.slane %v441, 4
    %v443 = vmax.f32 %v441, %v442
    %v444 = vrot.slane %v443, 2
    %v445 = vmax.f32 %v443, %v444
    %v446 = vrot.slane %v445, 1
    %v447 = vmax.f32 %v445, %v446
    %v448 = vsel %vm45, %v345, -inf
    %v449 = vrot.slane %v448, 4
    %v450 = vmax.f32 %v448, %v449
    %v451 = vrot.slane %v450, 2
    %v452 = vmax.f32 %v450, %v451
    %v453 = vrot.slane %v452, 1
    %v454 = vmax.f32 %v452, %v453
    %v455 = vsel %vm45, %v348, -inf
    %v456 = vrot.slane %v455, 4
    %v457 = vmax.f32 %v455, %v456
    %v458 = vrot.slane %v457, 2
    %v459 = vmax.f32 %v457, %v458
    %v460 = vrot.slane %v459, 1
    %v461 = vmax.f32 %v459, %v460
    %v462 = vsub.f32 %v303, %v356
    %v463 = vsub.f32 %v306, %v363
    %v464 = vsub.f32 %v309, %v370
    %v465 = vsub.f32 %v312, %v377
    %v466 = vsub.f32 %v315, %v384
    %v467 = vsub.f32 %v318, %v391
    %v468 = vsub.f32 %v321, %v398
    %v469 = vsub.f32 %v324, %v405
    %v470 = vsub.f32 %v327, %v412
    %v471 = vsub.f32 %v330, %v419
    %v472 = vsub.f32 %v333, %v426
    %v473 = vsub.f32 %v336, %v433
    %v474 = vsub.f32 %v339, %v440
    %v475 = vsub.f32 %v342, %v447
    %v476 = vsub.f32 %v345, %v454
    %v477 = vsub.f32 %v348, %v461
    %v478 = vmul.f32 %v462, 1.442695
    %v479 = vpow.pop %v478
    %v480 = vmul.f32 %v463, 1.442695
    %v481 = vpow.pop %v480
    %v482 = vmul.f32 %v464, 1.442695
    %v483 = vpow.pop %v482
    %v484 = vmul.f32 %v465, 1.442695
    %v485 = vpow.pop %v484
    %v486 = vmul.f32 %v466, 1.442695
    %v487 = vpow.pop %v486
    %v488 = vmul.f32 %v467, 1.442695
    %v489 = vpow.pop %v488
    %v490 = vmul.f32 %v468, 1.442695
    %v491 = vpow.pop %v490
    %v492 = vmul.f32 %v469, 1.442695
    %v493 = vpow.pop %v492
    %v494 = vmul.f32 %v470, 1.442695
    %v495 = vpow.pop %v494
    %v496 = vmul.f32 %v471, 1.442695
    %v497 = vpow.pop %v496
    %v498 = vmul.f32 %v472, 1.442695
    %v499 = vpow.pop %v498
    %v500 = vmul.f32 %v473, 1.442695
    %v501 = vpow.pop %v500
    %v502 = vmul.f32 %v474, 1.442695
    %v503 = vpow.pop %v502
    %v504 = vmul.f32 %v475, 1.442695
    %v505 = vpow.pop %v504
    %v506 = vmul.f32 %v476, 1.442695
    %v507 = vpow.pop %v506
    %v508 = vmul.f32 %v477, 1.442695
    %v509 = vpow.pop %v508
    %v510 = vsel %vm45, %v479, 0.0
    %v511 = vrot.slane %v510, 4
    %v512 = vadd.f32 %v510, %v511
    %v513 = vrot.slane %v512, 2
    %v514 = vadd.f32 %v512, %v513
    %v515 = vrot.slane %v514, 1
    %v516 = vadd.f32 %v514, %v515
    %v517 = vsel %vm45, %v481, 0.0
    %v518 = vrot.slane %v517, 4
    %v519 = vadd.f32 %v517, %v518
    %v520 = vrot.slane %v519, 2
    %v521 = vadd.f32 %v519, %v520
    %v522 = vrot.slane %v521, 1
    %v523 = vadd.f32 %v521, %v522
    %v524 = vsel %vm45, %v483, 0.0
    %v525 = vrot.slane %v524, 4
    %v526 = vadd.f32 %v524, %v525
    %v527 = vrot.slane %v526, 2
    %v528 = vadd.f32 %v526, %v527
    %v529 = vrot.slane %v528, 1
    %v530 = vadd.f32 %v528, %v529
    %v531 = vsel %vm45, %v485, 0.0
    %v532 = vrot.slane %v531, 4
    %v533 = vadd.f32 %v531, %v532
    %v534 = vrot.slane %v533, 2
    %v535 = vadd.f32 %v533, %v534
    %v536 = vrot.slane %v535, 1
    %v537 = vadd.f32 %v535, %v536
    %v538 = vsel %vm45, %v487, 0.0
    %v539 = vrot.slane %v538, 4
    %v540 = vadd.f32 %v538, %v539
    %v541 = vrot.slane %v540, 2
    %v542 = vadd.f32 %v540, %v541
    %v543 = vrot.slane %v542, 1
    %v544 = vadd.f32 %v542, %v543
    %v545 = vsel %vm45, %v489, 0.0
    %v546 = vrot.slane %v545, 4
    %v547 = vadd.f32 %v545, %v546
    %v548 = vrot.slane %v547, 2
    %v549 = vadd.f32 %v547, %v548
    %v550 = vrot.slane %v549, 1
    %v551 = vadd.f32 %v549, %v550
    %v552 = vsel %vm45, %v491, 0.0
    %v553 = vrot.slane %v552, 4
    %v554 = vadd.f32 %v552, %v553
    %v555 = vrot.slane %v554, 2
    %v556 = vadd.f32 %v554, %v555
    %v557 = vrot.slane %v556, 1
    %v558 = vadd.f32 %v556, %v557
    %v559 = vsel %vm45, %v493, 0.0
    %v560 = vrot.slane %v559, 4
    %v561 = vadd.f32 %v559, %v560
    %v562 = vrot.slane %v561, 2
    %v563 = vadd.f32 %v561, %v562
    %v564 = vrot.slane %v563, 1
    %v565 = vadd.f32 %v563, %v564
    %v566 = vsel %vm45, %v495, 0.0
    %v567 = vrot.slane %v566, 4
    %v568 = vadd.f32 %v566, %v567
    %v569 = vrot.slane %v568, 2
    %v570 = vadd.f32 %v568, %v569
    %v571 = vrot.slane %v570, 1
    %v572 = vadd.f32 %v570, %v571
    %v573 = vsel %vm45, %v497, 0.0
    %v574 = vrot.slane %v573, 4
    %v575 = vadd.f32 %v573, %v574
    %v576 = vrot.slane %v575, 2
    %v577 = vadd.f32 %v575, %v576
    %v578 = vrot.slane %v577, 1
    %v579 = vadd.f32 %v577, %v578
    %v580 = vsel %vm45, %v499, 0.0
    %v581 = vrot.slane %v580, 4
    %v582 = vadd.f32 %v580, %v581
    %v583 = vrot.slane %v582, 2
    %v584 = vadd.f32 %v582, %v583
    %v585 = vrot.slane %v584, 1
    %v586 = vadd.f32 %v584, %v585
    %v587 = vsel %vm45, %v501, 0.0
    %v588 = vrot.slane %v587, 4
    %v589 = vadd.f32 %v587, %v588
    %v590 = vrot.slane %v589, 2
    %v591 = vadd.f32 %v589, %v590
    %v592 = vrot.slane %v591, 1
    %v593 = vadd.f32 %v591, %v592
    %v594 = vsel %vm45, %v503, 0.0
    %v595 = vrot.slane %v594, 4
    %v596 = vadd.f32 %v594, %v595
    %v597 = vrot.slane %v596, 2
    %v598 = vadd.f32 %v596, %v597
    %v599 = vrot.slane %v598, 1
    %v600 = vadd.f32 %v598, %v599
    %v601 = vsel %vm45, %v505, 0.0
    %v602 = vrot.slane %v601, 4
    %v603 = vadd.f32 %v601, %v602
    %v604 = vrot.slane %v603, 2
    %v605 = vadd.f32 %v603, %v604
    %v606 = vrot.slane %v605, 1
    %v607 = vadd.f32 %v605, %v606
    %v608 = vsel %vm45, %v507, 0.0
    %v609 = vrot.slane %v608, 4
    %v610 = vadd.f32 %v608, %v609
    %v611 = vrot.slane %v610, 2
    %v612 = vadd.f32 %v610, %v611
    %v613 = vrot.slane %v612, 1
    %v614 = vadd.f32 %v612, %v613
    %v615 = vsel %vm45, %v509, 0.0
    %v616 = vrot.slane %v615, 4
    %v617 = vadd.f32 %v615, %v616
    %v618 = vrot.slane %v617, 2
    %v619 = vadd.f32 %v617, %v618
    %v620 = vrot.slane %v619, 1
    %v621 = vadd.f32 %v619, %v620
    %v622 = vrcp.pop %v516
    %v623 = vmul.f32 %v516, %v622
    %v624 = vsub.f32 1.0, %v623
    %v625 = vmul.f32 %v622, %v624
    %v626 = vadd.f32 %v622, %v625
    %vm627 = vweird.f32 %v516
    %vm628 = vweird.f32 %v622
    %vm629 = vmor %vm627, %vm628
    %v630 = vsel %vm629, %v622, %v626
    %v631 = vand.u32 2147483647, %v516
    %vm632 = vcmp.eq.f32.partialorder %v631, 8.507059e+37
    %v633 = vand.u32 %v516, 2147483648
    %v634 = vor.u32 1.1754944e-38, %v633
    %v635 = vsel %vm632, %v634, %v630
    %v636 = vmul.f32 %v479, %v635
    %v637 = vrcp.pop %v523
    %v638 = vmul.f32 %v523, %v637
    %v639 = vsub.f32 1.0, %v638
    %v640 = vmul.f32 %v637, %v639
    %v641 = vadd.f32 %v637, %v640
    %vm642 = vweird.f32 %v523
    %vm643 = vweird.f32 %v637
    %vm644 = vmor %vm642, %vm643
    %v645 = vsel %vm644, %v637, %v641
    %v646 = vand.u32 2147483647, %v523
    %vm647 = vcmp.eq.f32.partialorder %v646, 8.507059e+37
    %v648 = vand.u32 %v523, 2147483648
    %v649 = vor.u32 1.1754944e-38, %v648
    %v650 = vsel %vm647, %v649, %v645
    %v651 = vmul.f32 %v481, %v650
    %v652 = vrcp.pop %v530
    %v653 = vmul.f32 %v530, %v652
    %v654 = vsub.f32 1.0, %v653
    %v655 = vmul.f32 %v652, %v654
    %v656 = vadd.f32 %v652, %v655
    %vm657 = vweird.f32 %v530
    %vm658 = vweird.f32 %v652
    %vm659 = vmor %vm657, %vm658
    %v660 = vsel %vm659, %v652, %v656
    %v661 = vand.u32 2147483647, %v530
    %vm662 = vcmp.eq.f32.partialorder %v661, 8.507059e+37
    %v663 = vand.u32 %v530, 2147483648
    %v664 = vor.u32 1.1754944e-38, %v663
    %v665 = vsel %vm662, %v664, %v660
    %v666 = vmul.f32 %v483, %v665
    %v667 = vrcp.pop %v537
    %v668 = vmul.f32 %v537, %v667
    %v669 = vsub.f32 1.0, %v668
    %v670 = vmul.f32 %v667, %v669
    %v671 = vadd.f32 %v667, %v670
    %vm672 = vweird.f32 %v537
    %vm673 = vweird.f32 %v667
    %vm674 = vmor %vm672, %vm673
    %v675 = vsel %vm674, %v667, %v671
    %v676 = vand.u32 2147483647, %v537
    %vm677 = vcmp.eq.f32.partialorder %v676, 8.507059e+37
    %v678 = vand.u32 %v537, 2147483648
    %v679 = vor.u32 1.1754944e-38, %v678
    %v680 = vsel %vm677, %v679, %v675
    %v681 = vmul.f32 %v485, %v680
    %v682 = vrcp.pop %v544
    %v683 = vmul.f32 %v544, %v682
    %v684 = vsub.f32 1.0, %v683
    %v685 = vmul.f32 %v682, %v684
    %v686 = vadd.f32 %v682, %v685
    %vm687 = vweird.f32 %v544
    %vm688 = vweird.f32 %v682
    %vm689 = vmor %vm687, %vm688
    %v690 = vsel %vm689, %v682, %v686
    %v691 = vand.u32 2147483647, %v544
    %vm692 = vcmp.eq.f32.partialorder %v691, 8.507059e+37
    %v693 = vand.u32 %v544, 2147483648
    %v694 = vor.u32 1.1754944e-38, %v693
    %v695 = vsel %vm692, %v694, %v690
    %v696 = vmul.f32 %v487, %v695
    %v697 = vrcp.pop %v551
    %v698 = vmul.f32 %v551, %v697
    %v699 = vsub.f32 1.0, %v698
    %v700 = vmul.f32 %v697, %v699
    %v701 = vadd.f32 %v697, %v700
    %vm702 = vweird.f32 %v551
    %vm703 = vweird.f32 %v697
    %vm704 = vmor %vm702, %vm703
    %v705 = vsel %vm704, %v697, %v701
    %v706 = vand.u32 2147483647, %v551
    %vm707 = vcmp.eq.f32.partialorder %v706, 8.507059e+37
    %v708 = vand.u32 %v551, 2147483648
    %v709 = vor.u32 1.1754944e-38, %v708
    %v710 = vsel %vm707, %v709, %v705
    %v711 = vmul.f32 %v489, %v710
    %v712 = vrcp.pop %v558
    %v713 = vmul.f32 %v558, %v712
    %v714 = vsub.f32 1.0, %v713
    %v715 = vmul.f32 %v712, %v714
    %v716 = vadd.f32 %v712, %v715
    %vm717 = vweird.f32 %v558
    %vm718 = vweird.f32 %v712
    %vm719 = vmor %vm717, %vm718
    %v720 = vsel %vm719, %v712, %v716
    %v721 = vand.u32 2147483647, %v558
    %vm722 = vcmp.eq.f32.partialorder %v721, 8.507059e+37
    %v723 = vand.u32 %v558, 2147483648
    %v724 = vor.u32 1.1754944e-38, %v723
    %v725 = vsel %vm722, %v724, %v720
    %v726 = vmul.f32 %v491, %v725
    %v727 = vrcp.pop %v565
    %v728 = vmul.f32 %v565, %v727
    %v729 = vsub.f32 1.0, %v728
    %v730 = vmul.f32 %v727, %v729
    %v731 = vadd.f32 %v727, %v730
    %vm732 = vweird.f32 %v565
    %vm733 = vweird.f32 %v727
    %vm734 = vmor %vm732, %vm733
    %v735 = vsel %vm734, %v727, %v731
    %v736 = vand.u32 2147483647, %v565
    %vm737 = vcmp.eq.f32.partialorder %v736, 8.507059e+37
    %v738 = vand.u32 %v565, 2147483648
    %v739 = vor.u32 1.1754944e-38, %v738
    %v740 = vsel %vm737, %v739, %v735
    %v741 = vmul.f32 %v493, %v740
    %v742 = vrcp.pop %v572
    %v743 = vmul.f32 %v572, %v742
    %v744 = vsub.f32 1.0, %v743
    %v745 = vmul.f32 %v742, %v744
    %v746 = vadd.f32 %v742, %v745
    %vm747 = vweird.f32 %v572
    %vm748 = vweird.f32 %v742
    %vm749 = vmor %vm747, %vm748
    %v750 = vsel %vm749, %v742, %v746
    %v751 = vand.u32 2147483647, %v572
    %vm752 = vcmp.eq.f32.partialorder %v751, 8.507059e+37
    %v753 = vand.u32 %v572, 2147483648
    %v754 = vor.u32 1.1754944e-38, %v753
    %v755 = vsel %vm752, %v754, %v750
    %v756 = vmul.f32 %v495, %v755
    %v757 = vrcp.pop %v579
    %v758 = vmul.f32 %v579, %v757
    %v759 = vsub.f32 1.0, %v758
    %v760 = vmul.f32 %v757, %v759
    %v761 = vadd.f32 %v757, %v760
    %vm762 = vweird.f32 %v579
    %vm763 = vweird.f32 %v757
    %vm764 = vmor %vm762, %vm763
    %v765 = vsel %vm764, %v757, %v761
    %v766 = vand.u32 2147483647, %v579
    %vm767 = vcmp.eq.f32.partialorder %v766, 8.507059e+37
    %v768 = vand.u32 %v579, 2147483648
    %v769 = vor.u32 1.1754944e-38, %v768
    %v770 = vsel %vm767, %v769, %v765
    %v771 = vmul.f32 %v497, %v770
    %v772 = vrcp.pop %v586
    %v773 = vmul.f32 %v586, %v772
    %v774 = vsub.f32 1.0, %v773
    %v775 = vmul.f32 %v772, %v774
    %v776 = vadd.f32 %v772, %v775
    %vm777 = vweird.f32 %v586
    %vm778 = vweird.f32 %v772
    %vm779 = vmor %vm777, %vm778
    %v780 = vsel %vm779, %v772, %v776
    %v781 = vand.u32 2147483647, %v586
    %vm782 = vcmp.eq.f32.partialorder %v781, 8.507059e+37
    %v783 = vand.u32 %v586, 2147483648
    %v784 = vor.u32 1.1754944e-38, %v783
    %v785 = vsel %vm782, %v784, %v780
    %v786 = vmul.f32 %v499, %v785
    %v787 = vrcp.pop %v593
    %v788 = vmul.f32 %v593, %v787
    %v789 = vsub.f32 1.0, %v788
    %v790 = vmul.f32 %v787, %v789
    %v791 = vadd.f32 %v787, %v790
    %vm792 = vweird.f32 %v593
    %vm793 = vweird.f32 %v787
    %vm794 = vmor %vm792, %vm793
    %v795 = vsel %vm794, %v787, %v791
    %v796 = vand.u32 2147483647, %v593
    %vm797 = vcmp.eq.f32.partialorder %v796, 8.507059e+37
    %v798 = vand.u32 %v593, 2147483648
    %v799 = vor.u32 1.1754944e-38, %v798
    %v800 = vsel %vm797, %v799, %v795
    %v801 = vmul.f32 %v501, %v800
    %v802 = vrcp.pop %v600
    %v803 = vmul.f32 %v600, %v802
    %v804 = vsub.f32 1.0, %v803
    %v805 = vmul.f32 %v802, %v804
    %v806 = vadd.f32 %v802, %v805
    %vm807 = vweird.f32 %v600
    %vm808 = vweird.f32 %v802
    %vm809 = vmor %vm807, %vm808
    %v810 = vsel %vm809, %v802, %v806
    %v811 = vand.u32 2147483647, %v600
    %vm812 = vcmp.eq.f32.partialorder %v811, 8.507059e+37
    %v813 = vand.u32 %v600, 2147483648
    %v814 = vor.u32 1.1754944e-38, %v813
    %v815 = vsel %vm812, %v814, %v810
    %v816 = vmul.f32 %v503, %v815
    %v817 = vrcp.pop %v607
    %v818 = vmul.f32 %v607, %v817
    %v819 = vsub.f32 1.0, %v818
    %v820 = vmul.f32 %v817, %v819
    %v821 = vadd.f32 %v817, %v820
    %vm822 = vweird.f32 %v607
    %vm823 = vweird.f32 %v817
    %vm824 = vmor %vm822, %vm823
    %v825 = vsel %vm824, %v817, %v821
    %v826 = vand.u32 2147483647, %v607
    %vm827 = vcmp.eq.f32.partialorder %v826, 8.507059e+37
    %v828 = vand.u32 %v607, 2147483648
    %v829 = vor.u32 1.1754944e-38, %v828
    %v830 = vsel %vm827, %v829, %v825
    %v831 = vmul.f32 %v505, %v830
    %v832 = vrcp.pop %v614
    %v833 = vmul.f32 %v614, %v832
    %v834 = vsub.f32 1.0, %v833
    %v835 = vmul.f32 %v832, %v834
    %v836 = vadd.f32 %v832, %v835
    %vm837 = vweird.f32 %v614
    %vm838 = vweird.f32 %v832
    %vm839 = vmor %vm837, %vm838
    %v840 = vsel %vm839, %v832, %v836
    %v841 = vand.u32 2147483647, %v614
    %vm842 = vcmp.eq.f32.partialorder %v841, 8.507059e+37
    %v843 = vand.u32 %v614, 2147483648
    %v844 = vor.u32 1.1754944e-38, %v843
    %v845 = vsel %vm842, %v844, %v840
    %v846 = vmul.f32 %v507, %v845
    %v847 = vrcp.pop %v621
    %v848 = vmul.f32 %v621, %v847
    %v849 = vsub.f32 1.0, %v848
    %v850 = vmul.f32 %v847, %v849
    %v851 = vadd.f32 %v847, %v850
    %vm852 = vweird.f32 %v621
    %vm853 = vweird.f32 %v847
    %vm854 = vmor %vm852, %vm853
    %v855 = vsel %vm854, %v847, %v851
    %v856 = vand.u32 2147483647, %v621
    %vm857 = vcmp.eq.f32.partialorder %v856, 8.507059e+37
    %v858 = vand.u32 %v621, 2147483648
    %v859 = vor.u32 1.1754944e-38, %v858
    %v860 = vsel %vm857, %v859, %v855
    %v861 = vmul.f32 %v509, %v860
    %864 = vrot.lane.b32.xlu0 %v147, 64
    %v865 = vpop.permute.xlu0 %864
    %866 = vrot.lane.b32.xlu0 %v148, 64
    %v867 = vpop.permute.xlu0 %866
    %v870 = vmul.f32 %v636, %v865
    %v871 = vmul.f32 %v651, %v865
    %v872 = vmul.f32 %v666, %v865
    %v873 = vmul.f32 %v681, %v865
    %v874 = vmul.f32 %v696, %v865
    %v875 = vmul.f32 %v711, %v865
    %v876 = vmul.f32 %v726, %v865
    %v877 = vmul.f32 %v741, %v865
    %v878 = vmul.f32 %v756, %v867
    %v879 = vmul.f32 %v771, %v867
    %v880 = vmul.f32 %v786, %v867
    %v881 = vmul.f32 %v801, %v867
    %v882 = vmul.f32 %v816, %v867
    %v883 = vmul.f32 %v831, %v867
    %v884 = vmul.f32 %v846, %v867
    %v885 = vmul.f32 %v861, %v867
    %v886 = vsel %vm45, %v870, 0.0
    %v887 = vrot.slane %v886, 4
    %v888 = vadd.f32 %v886, %v887
    %v889 = vrot.slane %v888, 2
    %v890 = vadd.f32 %v888, %v889
    %v891 = vrot.slane %v890, 1
    %v892 = vadd.f32 %v890, %v891
    %v893 = vsel %vm45, %v871, 0.0
    %v894 = vrot.slane %v893, 4
    %v895 = vadd.f32 %v893, %v894
    %v896 = vrot.slane %v895, 2
    %v897 = vadd.f32 %v895, %v896
    %v898 = vrot.slane %v897, 1
    %v899 = vadd.f32 %v897, %v898
    %v900 = vsel %vm45, %v872, 0.0
    %v901 = vrot.slane %v900, 4
    %v902 = vadd.f32 %v900, %v901
    %v903 = vrot.slane %v902, 2
    %v904 = vadd.f32 %v902, %v903
    %v905 = vrot.slane %v904, 1
    %v906 = vadd.f32 %v904, %v905
    %v907 = vsel %vm45, %v873, 0.0
    %v908 = vrot.slane %v907, 4
    %v909 = vadd.f32 %v907, %v908
    %v910 = vrot.slane %v909, 2
    %v911 = vadd.f32 %v909, %v910
    %v912 = vrot.slane %v911, 1
    %v913 = vadd.f32 %v911, %v912
    %v914 = vsel %vm45, %v874, 0.0
    %v915 = vrot.slane %v914, 4
    %v916 = vadd.f32 %v914, %v915
    %v917 = vrot.slane %v916, 2
    %v918 = vadd.f32 %v916, %v917
    %v919 = vrot.slane %v918, 1
    %v920 = vadd.f32 %v918, %v919
    %v921 = vsel %vm45, %v875, 0.0
    %v922 = vrot.slane %v921, 4
    %v923 = vadd.f32 %v921, %v922
    %v924 = vrot.slane %v923, 2
    %v925 = vadd.f32 %v923, %v924
    %v926 = vrot.slane %v925, 1
    %v927 = vadd.f32 %v925, %v926
    %v928 = vsel %vm45, %v876, 0.0
    %v929 = vrot.slane %v928, 4
    %v930 = vadd.f32 %v928, %v929
    %v931 = vrot.slane %v930, 2
    %v932 = vadd.f32 %v930, %v931
    %v933 = vrot.slane %v932, 1
    %v934 = vadd.f32 %v932, %v933
    %v935 = vsel %vm45, %v877, 0.0
    %v936 = vrot.slane %v935, 4
    %v937 = vadd.f32 %v935, %v936
    %v938 = vrot.slane %v937, 2
    %v939 = vadd.f32 %v937, %v938
    %v940 = vrot.slane %v939, 1
    %v941 = vadd.f32 %v939, %v940
    %v942 = vsel %vm45, %v878, 0.0
    %v943 = vrot.slane %v942, 4
    %v944 = vadd.f32 %v942, %v943
    %v945 = vrot.slane %v944, 2
    %v946 = vadd.f32 %v944, %v945
    %v947 = vrot.slane %v946, 1
    %v948 = vadd.f32 %v946, %v947
    %v949 = vsel %vm45, %v879, 0.0
    %v950 = vrot.slane %v949, 4
    %v951 = vadd.f32 %v949, %v950
    %v952 = vrot.slane %v951, 2
    %v953 = vadd.f32 %v951, %v952
    %v954 = vrot.slane %v953, 1
    %v955 = vadd.f32 %v953, %v954
    %v956 = vsel %vm45, %v880, 0.0
    %v957 = vrot.slane %v956, 4
    %v958 = vadd.f32 %v956, %v957
    %v959 = vrot.slane %v958, 2
    %v960 = vadd.f32 %v958, %v959
    %v961 = vrot.slane %v960, 1
    %v962 = vadd.f32 %v960, %v961
    %v963 = vsel %vm45, %v881, 0.0
    %v964 = vrot.slane %v963, 4
    %v965 = vadd.f32 %v963, %v964
    %v966 = vrot.slane %v965, 2
    %v967 = vadd.f32 %v965, %v966
    %v968 = vrot.slane %v967, 1
    %v969 = vadd.f32 %v967, %v968
    %v970 = vsel %vm45, %v882, 0.0
    %v971 = vrot.slane %v970, 4
    %v972 = vadd.f32 %v970, %v971
    %v973 = vrot.slane %v972, 2
    %v974 = vadd.f32 %v972, %v973
    %v975 = vrot.slane %v974, 1
    %v976 = vadd.f32 %v974, %v975
    %v977 = vsel %vm45, %v883, 0.0
    %v978 = vrot.slane %v977, 4
    %v979 = vadd.f32 %v977, %v978
    %v980 = vrot.slane %v979, 2
    %v981 = vadd.f32 %v979, %v980
    %v982 = vrot.slane %v981, 1
    %v983 = vadd.f32 %v981, %v982
    %v984 = vsel %vm45, %v884, 0.0
    %v985 = vrot.slane %v984, 4
    %v986 = vadd.f32 %v984, %v985
    %v987 = vrot.slane %v986, 2
    %v988 = vadd.f32 %v986, %v987
    %v989 = vrot.slane %v988, 1
    %v990 = vadd.f32 %v988, %v989
    %v991 = vsel %vm45, %v885, 0.0
    %v992 = vrot.slane %v991, 4
    %v993 = vadd.f32 %v991, %v992
    %v994 = vrot.slane %v993, 2
    %v995 = vadd.f32 %v993, %v994
    %v996 = vrot.slane %v995, 1
    %v997 = vadd.f32 %v995, %v996
    %vm1014 = vcmask 1041409
    %v1015 = vsel %vm1014, %v899, %v892
    %vm1016 = vcmask 1042434
    %v1017 = vsel %vm1016, %v906, %v1015
    %vm1018 = vcmask 1043459
    %v1019 = vsel %vm1018, %v913, %v1017
    %vm1020 = vcmask 1044484
    %v1021 = vsel %vm1020, %v920, %v1019
    %vm1022 = vcmask 1045509
    %v1023 = vsel %vm1022, %v927, %v1021
    %vm1024 = vcmask 1046534
    %v1025 = vsel %vm1024, %v934, %v1023
    %vm1026 = vcmask 1047559
    %v1027 = vsel %vm1026, %v941, %v1025
    %v1028 = vsel %vm1014, %v955, %v948
    %v1029 = vsel %vm1016, %v962, %v1028
    %v1030 = vsel %vm1018, %v969, %v1029
    %v1031 = vsel %vm1020, %v976, %v1030
    %v1032 = vsel %vm1022, %v983, %v1031
    %v1033 = vsel %vm1024, %v990, %v1032
    %v1034 = vsel %vm1026, %v997, %v1033
    %1039 = vrot.lane.b32.xlu0 %v37, 32
    %v1040 = vpop.permute.xlu0 %1039
    %1041 = vrot.lane.b32.xlu0 %v39, 32
    %v1042 = vpop.permute.xlu0 %1041
    %1043 = vrot.lane.b32.xlu0 %v41, 32
    %v1044 = vpop.permute.xlu0 %1043
    %1045 = vrot.lane.b32.xlu0 %v43, 32
    %v1046 = vpop.permute.xlu0 %1045
    %v1051 = vsel %vm45, %v1027, 0
    %v1053 = vsel %vm45, %v1034, 0
    %1055 = vmatpush.msra.mxu0 0.0
    %1056 = vmatpush.msra.mxu0 0.0
    %1057 = vmatpush.msra.mxu0 0.0
    %1058 = vmatpush.msra.mxu0 0.0
    %1059 = vmatpush.msra.mxu0 0.0
    %1060 = vmatpush.msra.mxu0 0.0
    %1061 = vmatpush.msra.mxu0 0.0
    %1062 = vmatpush.msra.mxu0 0.0
    %1063 = vmatpush.msra.mxu0 0.0
    %1064 = vmatpush.msra.mxu0 0.0
    %1065 = vmatpush.msra.mxu0 0.0
    %1066 = vmatpush.msra.mxu0 0.0
    %1067 = vmatpush.msra.mxu0 %v1046
    %1068 = vmatpush.msra.mxu0 %v1044
    %1069 = vmatpush.msra.mxu0 %v1042
    %1070 = vmatpush.msra.mxu0 %v1040
    %1071 = vmatmul.f32.gmra.mxu0 %v1051
    %v1072 = vpop.f32.mrf.mxu0
    %v1073 = vadd.f32 0.0, %v1072
    %1074 = vmatmul.f32.gmra.mxu0 %v1053
    %v1075 = vpop.f32.mrf.mxu0
    %v1076 = vadd.f32 0.0, %v1075
    %1077 = vdwg.mxu0
    %v1078 = vperm.slane %v35, 7
    %v1079 = vadd.f32 %v1073, %v1078
    %v1080 = vadd.f32 %v1076, %v1078
    %v1081 = vsel %vm45, %v1079, 0.0
    %1082 = vadd.xlane.f32.xlu0 %v1081
    %v1083 = vpop.xlane.xlu0 %1082
    %v1084 = vsel %vm45, %v1080, 0.0
    %1085 = vadd.xlane.f32.xlu0 %v1084
    %v1086 = vpop.xlane.xlu0 %1085
    %v1087 = vmul.f32 %v1083, %v58
    %v1088 = vmul.f32 %v1086, %v58
    %v1089 = vsub.f32 %v1079, %v1087
    %v1090 = vsub.f32 %v1080, %v1088
    %v1091 = vmul.f32 %v1089, %v1089
    %v1092 = vmul.f32 %v1090, %v1090
    %v1093 = vsel %vm45, %v1091, 0.0
    %1094 = vadd.xlane.f32.xlu0 %v1093
    %v1095 = vpop.xlane.xlu0 %1094
    %v1096 = vsel %vm45, %v1092, 0.0
    %1097 = vadd.xlane.f32.xlu0 %v1096
    %v1098 = vpop.xlane.xlu0 %1097
    %v1099 = vmul.f32 %v1095, %v58
    %v1100 = vmul.f32 %v1098, %v58
    %v1101 = vadd.f32 %v1099, 1e-05
    %v1102 = vadd.f32 %v1100, 1e-05
    %v1103 = vrsqrt.pop %v1101
    %v1104 = vmul.f32 %v1103, %v1101
    %v1105 = vmul.f32 %v1104, %v1103
    %v1106 = vmul.f32 0.5, %v1105
    %v1107 = vsub.f32 1.5, %v1106
    %v1108 = vmul.f32 %v1103, %v1107
    %vm1109 = vweird.f32 %v1101
    %vm1110 = vweird.f32 %v1103
    %vm1111 = vmor %vm1109, %vm1110
    %v1112 = vsel %vm1111, %v1103, %v1108
    %v1113 = vrsqrt.pop %v1102
    %v1114 = vmul.f32 %v1113, %v1102
    %v1115 = vmul.f32 %v1114, %v1113
    %v1116 = vmul.f32 0.5, %v1115
    %v1117 = vsub.f32 1.5, %v1116
    %v1118 = vmul.f32 %v1113, %v1117
    %vm1119 = vweird.f32 %v1102
    %vm1120 = vweird.f32 %v1113
    %vm1121 = vmor %vm1119, %vm1120
    %v1122 = vsel %vm1121, %v1113, %v1118
    %v1123 = vmul.f32 %v1089, %v1112
    %v1124 = vmul.f32 %v1090, %v1122
    %v1125 = vperm.slane %v35, 5
    %v1126 = vmul.f32 %v1123, %v1125
    %v1127 = vmul.f32 %v1124, %v1125
    %v1128 = vperm.slane %v35, 6
    %v1129 = vadd.f32 %v1126, %v1128
    %v1130 = vadd.f32 %v1127, %v1128
    %v1131 = vadd.f32 %v101, %v1129
    %v1132 = vadd.f32 %v102, %v1130
    %v1134 = vsel %vm45, %v1131, 0
    %v1137 = vsel %vm45, %v1132, 0
    %1139 = vmatpush.msra.mxu0 0.0
    %1140 = vmatpush.msra.mxu0 0.0
    %1141 = vmatpush.msra.mxu0 0.0
    %1142 = vmatpush.msra.mxu0 0.0
    %1143 = vmatpush.msra.mxu0 0.0
    %1144 = vmatpush.msra.mxu0 0.0
    %1145 = vmatpush.msra.mxu0 0.0
    %1146 = vmatpush.msra.mxu0 0.0
    %1147 = vmatpush.msra.mxu0 0.0
    %1148 = vmatpush.msra.mxu0 0.0
    %1149 = vmatpush.msra.mxu0 0.0
    %1150 = vmatpush.msra.mxu0 0.0
    %1151 = vmatpush.msra.mxu0 %v44
    %1152 = vmatpush.msra.mxu0 %v42
    %1153 = vmatpush.msra.mxu0 %v40
    %1154 = vmatpush.msra.mxu0 %v38
    %1155 = vmatmul.f32.gmra.mxu0 %v1134
    %v1156 = vpop.f32.mrf.mxu0
    %v1157 = vadd.f32 0.0, %v1156
    %1158 = vmatmul.f32.gmra.mxu0 %v1137
    %v1159 = vpop.f32.mrf.mxu0
    %v1160 = vadd.f32 0.0, %v1159
    %1161 = vdwg.mxu0
    %v1162 = vperm.slane %v36, 0
    %v1163 = vadd.f32 %v1157, %v1162
    %v1164 = vadd.f32 %v1160, %v1162
    %v1165 = vmul.f32 %v1163, 0.5
    %v1166 = vmul.f32 %v1164, 0.5
    %v1167 = vmul.f32 %v1163, 0.70710677
    %v1168 = vmul.f32 %v1164, 0.70710677
    %vm1169 = vcmp.ge.f32.partialorder %v1167, 0.0
    %vm1170 = vcmp.ge.f32.partialorder %v1168, 0.0
    %v1171 = vsel %vm1169, 1.0, -1.0
    %v1172 = vsel %vm1170, 1.0, -1.0
    %v1173 = vand.u32 2147483647, %v1167
    %v1174 = vand.u32 2147483647, %v1168
    %v1175 = vmul.f32 %v1173, 0.3275911
    %v1176 = vmul.f32 %v1174, 0.3275911
    %v1177 = vadd.f32 %v1175, 1.0
    %v1178 = vadd.f32 %v1176, 1.0
    %v1179 = vrcp.pop %v1177
    %v1180 = vmul.f32 %v1177, %v1179
    %v1181 = vsub.f32 1.0, %v1180
    %v1182 = vmul.f32 %v1179, %v1181
    %v1183 = vadd.f32 %v1179, %v1182
    %vm1184 = vweird.f32 %v1177
    %vm1185 = vweird.f32 %v1179
    %vm1186 = vmor %vm1184, %vm1185
    %v1187 = vsel %vm1186, %v1179, %v1183
    %v1188 = vand.u32 2147483647, %v1177
    %vm1189 = vcmp.eq.f32.partialorder %v1188, 8.507059e+37
    %v1190 = vand.u32 %v1177, 2147483648
    %v1191 = vor.u32 1.1754944e-38, %v1190
    %v1192 = vsel %vm1189, %v1191, %v1187
    %v1193 = vmul.f32 1.0, %v1192
    %v1194 = vrcp.pop %v1178
    %v1195 = vmul.f32 %v1178, %v1194
    %v1196 = vsub.f32 1.0, %v1195
    %v1197 = vmul.f32 %v1194, %v1196
    %v1198 = vadd.f32 %v1194, %v1197
    %vm1199 = vweird.f32 %v1178
    %vm1200 = vweird.f32 %v1194
    %vm1201 = vmor %vm1199, %vm1200
    %v1202 = vsel %vm1201, %v1194, %v1198
    %v1203 = vand.u32 2147483647, %v1178
    %vm1204 = vcmp.eq.f32.partialorder %v1203, 8.507059e+37
    %v1205 = vand.u32 %v1178, 2147483648
    %v1206 = vor.u32 1.1754944e-38, %v1205
    %v1207 = vsel %vm1204, %v1206, %v1202
    %v1208 = vmul.f32 1.0, %v1207
    %v1209 = vmul.f32 %v1193, 1.0614054
    %v1210 = vmul.f32 %v1208, 1.0614054
    %v1211 = vadd.f32 %v1209, -1.4531521
    %v1212 = vadd.f32 %v1210, -1.4531521
    %v1213 = vmul.f32 %v1211, %v1193
    %v1214 = vmul.f32 %v1212, %v1208
    %v1215 = vadd.f32 %v1213, 1.4214138
    %v1216 = vadd.f32 %v1214, 1.4214138
    %v1217 = vmul.f32 %v1215, %v1193
    %v1218 = vmul.f32 %v1216, %v1208
    %v1219 = vadd.f32 %v1217, -0.28449672
    %v1220 = vadd.f32 %v1218, -0.28449672
    %v1221 = vmul.f32 %v1219, %v1193
    %v1222 = vmul.f32 %v1220, %v1208
    %v1223 = vadd.f32 %v1221, 0.2548296
    %v1224 = vadd.f32 %v1222, 0.2548296
    %v1225 = vmul.f32 %v1223, %v1193
    %v1226 = vmul.f32 %v1224, %v1208
    %v1227 = vsub.f32 0.0, %v1173
    %v1228 = vsub.f32 0.0, %v1174
    %v1229 = vmul.f32 %v1227, %v1173
    %v1230 = vmul.f32 %v1228, %v1174
    %v1231 = vmul.f32 %v1229, 1.442695
    %v1232 = vpow.pop %v1231
    %v1233 = vmul.f32 %v1230, 1.442695
    %v1234 = vpow.pop %v1233
    %v1235 = vmul.f32 %v1225, %v1232
    %v1236 = vmul.f32 %v1226, %v1234
    %v1237 = vsub.f32 1.0, %v1235
    %v1238 = vsub.f32 1.0, %v1236
    %v1239 = vmul.f32 %v1171, %v1237
    %v1240 = vmul.f32 %v1172, %v1238
    %v1241 = vadd.f32 %v1239, 1.0
    %v1242 = vadd.f32 %v1240, 1.0
    %v1243 = vmul.f32 %v1165, %v1241
    %v1244 = vmul.f32 %v1166, %v1242
    %v1245 = vadd.f32 %v1131, %v1243
    %v1246 = vadd.f32 %v1132, %v1244
    %1247 = vst.msk [vmem:[%s4 + $0x4] sm:$0xff] %vm45, %v1245
    %1248 = vst.msk [vmem:[%s4 + $0x14] sm:$0xff] %vm45, %v1246
    %v1249 = vld [vmem:[%s0] sm:$0xf]
    %v1250 = vld [vmem:[%s0 + $0x4] sm:$0xf]
    %s1251 = scalar_lea.vmem %s2, 16
    %v1252 = vld [vmem:[%s1251] sm:$0xff]
    %v1253 = vld [vmem:[%s1251 + $0x8] sm:$0x1]
    %s1254 = scalar_lea.vmem [#allocation2], 64
    %v1255 = vld [vmem:[%s1254] sm:$0xff]
    %v1256 = vld [vmem:[%s1254 + $0x8] sm:$0xff]
    %v1257 = vld [vmem:[%s1254 + $0x10] sm:$0xff]
    %v1258 = vld [vmem:[%s1254 + $0x18] sm:$0xff]
    %v1259 = vld [vmem:[%s1254 + $0x20] sm:$0xff]
    %v1260 = vld [vmem:[%s1254 + $0x28] sm:$0xff]
    %v1261 = vld [vmem:[%s1254 + $0x30] sm:$0xff]
    %v1262 = vld [vmem:[%s1254 + $0x38] sm:$0xff]
    %vm1263 = vcmask 257024
    %v1264 = vsel %vm1263, %v1249, 0.0
    %1265 = vadd.xlane.f32.xlu0 %v1264
    %v1266 = vpop.xlane.xlu0 %1265
    %v1267 = vsel %vm1263, %v1250, 0.0
    %1268 = vadd.xlane.f32.xlu0 %v1267
    %v1269 = vpop.xlane.xlu0 %1268
    %v1270 = vmul.f32 %v1266, %v58
    %v1271 = vmul.f32 %v1269, %v58
    %v1272 = vsub.f32 %v1249, %v1270
    %v1273 = vsub.f32 %v1250, %v1271
    %v1274 = vmul.f32 %v1272, %v1272
    %v1275 = vmul.f32 %v1273, %v1273
    %v1276 = vsel %vm1263, %v1274, 0.0
    %1277 = vadd.xlane.f32.xlu0 %v1276
    %v1278 = vpop.xlane.xlu0 %1277
    %v1279 = vsel %vm1263, %v1275, 0.0
    %1280 = vadd.xlane.f32.xlu0 %v1279
    %v1281 = vpop.xlane.xlu0 %1280
    %v1282 = vmul.f32 %v1278, %v58
    %v1283 = vmul.f32 %v1281, %v58
    %v1284 = vadd.f32 %v1282, 1e-05
    %v1285 = vadd.f32 %v1283, 1e-05
    %v1286 = vrsqrt.pop %v1284
    %v1287 = vmul.f32 %v1286, %v1284
    %v1288 = vmul.f32 %v1287, %v1286
    %v1289 = vmul.f32 0.5, %v1288
    %v1290 = vsub.f32 1.5, %v1289
    %v1291 = vmul.f32 %v1286, %v1290
    %vm1292 = vweird.f32 %v1284
    %vm1293 = vweird.f32 %v1286
    %vm1294 = vmor %vm1292, %vm1293
    %v1295 = vsel %vm1294, %v1286, %v1291
    %v1296 = vrsqrt.pop %v1285
    %v1297 = vmul.f32 %v1296, %v1285
    %v1298 = vmul.f32 %v1297, %v1296
    %v1299 = vmul.f32 0.5, %v1298
    %v1300 = vsub.f32 1.5, %v1299
    %v1301 = vmul.f32 %v1296, %v1300
    %vm1302 = vweird.f32 %v1285
    %vm1303 = vweird.f32 %v1296
    %vm1304 = vmor %vm1302, %vm1303
    %v1305 = vsel %vm1304, %v1296, %v1301
    %v1306 = vmul.f32 %v1272, %v1295
    %v1307 = vmul.f32 %v1273, %v1305
    %v1308 = vperm.slane %v1252, 0
    %v1309 = vmul.f32 %v1306, %v1308
    %v1310 = vmul.f32 %v1307, %v1308
    %v1311 = vperm.slane %v1252, 1
    %v1312 = vadd.f32 %v1309, %v1311
    %v1313 = vadd.f32 %v1310, %v1311
    %v1314 = vsel %vm45, %v1245, 0.0
    %1315 = vadd.xlane.f32.xlu0 %v1314
    %v1316 = vpop.xlane.xlu0 %1315
    %v1317 = vsel %vm45, %v1246, 0.0
    %1318 = vadd.xlane.f32.xlu0 %v1317
    %v1319 = vpop.xlane.xlu0 %1318
    %v1320 = vmul.f32 %v1316, %v58
    %v1321 = vmul.f32 %v1319, %v58
    %v1322 = vsub.f32 %v1245, %v1320
    %v1323 = vsub.f32 %v1246, %v1321
    %v1324 = vmul.f32 %v1322, %v1322
    %v1325 = vmul.f32 %v1323, %v1323
    %v1326 = vsel %vm45, %v1324, 0.0
    %1327 = vadd.xlane.f32.xlu0 %v1326
    %v1328 = vpop.xlane.xlu0 %1327
    %v1329 = vsel %vm45, %v1325, 0.0
    %1330 = vadd.xlane.f32.xlu0 %v1329
    %v1331 = vpop.xlane.xlu0 %1330
    %v1332 = vmul.f32 %v1328, %v58
    %v1333 = vmul.f32 %v1331, %v58
    %v1334 = vadd.f32 %v1332, 1e-05
    %v1335 = vadd.f32 %v1333, 1e-05
    %v1336 = vrsqrt.pop %v1334
    %v1337 = vmul.f32 %v1336, %v1334
    %v1338 = vmul.f32 %v1337, %v1336
    %v1339 = vmul.f32 0.5, %v1338
    %v1340 = vsub.f32 1.5, %v1339
    %v1341 = vmul.f32 %v1336, %v1340
    %vm1342 = vweird.f32 %v1334
    %vm1343 = vweird.f32 %v1336
    %vm1344 = vmor %vm1342, %vm1343
    %v1345 = vsel %vm1344, %v1336, %v1341
    %v1346 = vrsqrt.pop %v1335
    %v1347 = vmul.f32 %v1346, %v1335
    %v1348 = vmul.f32 %v1347, %v1346
    %v1349 = vmul.f32 0.5, %v1348
    %v1350 = vsub.f32 1.5, %v1349
    %v1351 = vmul.f32 %v1346, %v1350
    %vm1352 = vweird.f32 %v1335
    %vm1353 = vweird.f32 %v1346
    %vm1354 = vmor %vm1352, %vm1353
    %v1355 = vsel %vm1354, %v1346, %v1351
    %v1356 = vmul.f32 %v1322, %v1345
    %v1357 = vmul.f32 %v1323, %v1355
    %1360 = vst [vmem:[#allocation1] ss:$2 sm:$0xff] %v1306
    %s1361 = scalar_lea.vmem [#allocation1], 1
    %1362 = vst [vmem:[%s1361] ss:$2 sm:$0xff] %v1307
    %v1363 = vld.sshfl [vmem:[#allocation1] sm:$0xff pattern:$0x75316420]
    %v1364 = vsel %vm45, %v1363, 0
    %1366 = vmatpush.msra.mxu0 0.0
    %1367 = vmatpush.msra.mxu0 0.0
    %1368 = vmatpush.msra.mxu0 0.0
    %1369 = vmatpush.msra.mxu0 0.0
    %1370 = vmatpush.msra.mxu0 0.0
    %1371 = vmatpush.msra.mxu0 0.0
    %1372 = vmatpush.msra.mxu0 0.0
    %1373 = vmatpush.msra.mxu0 0.0
    %1374 = vmatpush.msra.mxu0 0.0
    %1375 = vmatpush.msra.mxu0 0.0
    %1376 = vmatpush.msra.mxu0 0.0
    %1377 = vmatpush.msra.mxu0 0.0
    %1378 = vmatpush.msra.mxu0 %v1261
    %1379 = vmatpush.msra.mxu0 %v1259
    %1380 = vmatpush.msra.mxu0 %v1257
    %1381 = vmatpush.msra.mxu0 %v1255
    %1382 = vmatmul.f32.gmra.mxu0 %v1364
    %v1383 = vpop.f32.mrf.mxu0
    %v1384 = vadd.f32 0.0, %v1383
    %1385 = vdwg.mxu0
    %v1387 = vrot.slane %v1384, 4
    %v1389 = vperm.slane %v1252, 2
    %v1390 = vadd.f32 %v1384, %v1389
    %v1391 = vadd.f32 %v1387, %v1389
    %1396 = vrot.lane.b32.xlu0 %v1255, 96
    %v1397 = vpop.permute.xlu0 %1396
    %1398 = vrot.lane.b32.xlu0 %v1257, 96
    %v1399 = vpop.permute.xlu0 %1398
    %1400 = vrot.lane.b32.xlu0 %v1259, 96
    %v1401 = vpop.permute.xlu0 %1400
    %1402 = vrot.lane.b32.xlu0 %v1261, 96
    %v1403 = vpop.permute.xlu0 %1402
    %v1409 = vsel %vm45, %v1356, 0
    %v1412 = vsel %vm45, %v1357, 0
    %1414 = vmatpush.msra.mxu0 0.0
    %1415 = vmatpush.msra.mxu0 0.0
    %1416 = vmatpush.msra.mxu0 0.0
    %1417 = vmatpush.msra.mxu0 0.0
    %1418 = vmatpush.msra.mxu0 0.0
    %1419 = vmatpush.msra.mxu0 0.0
    %1420 = vmatpush.msra.mxu0 0.0
    %1421 = vmatpush.msra.mxu0 0.0
    %1422 = vmatpush.msra.mxu0 0.0
    %1423 = vmatpush.msra.mxu0 0.0
    %1424 = vmatpush.msra.mxu0 0.0
    %1425 = vmatpush.msra.mxu0 0.0
    %1426 = vmatpush.msra.mxu0 %v1403
    %1427 = vmatpush.msra.mxu0 %v1401
    %1428 = vmatpush.msra.mxu0 %v1399
    %1429 = vmatpush.msra.mxu0 %v1397
    %1430 = vmatmul.f32.gmra.mxu0 %v1409
    %v1431 = vpop.f32.mrf.mxu0
    %v1432 = vadd.f32 0.0, %v1431
    %1433 = vmatmul.f32.gmra.mxu0 %v1412
    %v1434 = vpop.f32.mrf.mxu0
    %v1435 = vadd.f32 0.0, %v1434
    %1436 = vdwg.mxu0
    %v1437 = vperm.slane %v1252, 3
    %v1438 = vadd.f32 %v1432, %v1437
    %v1439 = vadd.f32 %v1435, %v1437
    %v1440 = vperm.slane %v1252, 4
    %1442 = vrot.lane.b32.xlu0 %v1440, 32
    %v1443 = vpop.permute.xlu0 %1442
    %v1445 = vadd.f32 %v1432, %v1443
    %v1446 = vadd.f32 %v1435, %v1443
    %v1449 = vrot.slane %v1390, 3
    %v1450 = vrot.slane %v1391, 3
    %vm1451 = vcmask 1040384
    %v1452 = vsel %vm1451, %v1390, %v1449
    %v1453 = vsel %vm1014, %v1390, %v1449
    %v1454 = vrot.slane %v1453, 1
    %v1455 = vsel %vm1016, %v1390, %v1449
    %v1456 = vrot.slane %v1455, 2
    %v1457 = vsel %vm1018, %v1390, %v1449
    %v1458 = vrot.slane %v1457, 3
    %v1459 = vsel %vm1451, %v1391, %v1450
    %v1460 = vsel %vm1014, %v1391, %v1450
    %v1461 = vrot.slane %v1460, 1
    %v1462 = vsel %vm1016, %v1391, %v1450
    %v1463 = vrot.slane %v1462, 2
    %v1464 = vsel %vm1018, %v1391, %v1450
    %v1465 = vrot.slane %v1464, 3
    %v1466 = vperm.slane %v1452, 0
    %v1467 = vperm.slane %v1454, 0
    %v1468 = vperm.slane %v1456, 0
    %v1469 = vperm.slane %v1458, 0
    %v1470 = vperm.slane %v1459, 0
    %v1471 = vperm.slane %v1461, 0
    %v1472 = vperm.slane %v1463, 0
    %v1473 = vperm.slane %v1465, 0
    %v1482 = vmul.f32 %v1466, %v1438
    %v1483 = vmul.f32 %v1467, %v1438
    %v1484 = vmul.f32 %v1468, %v1438
    %v1485 = vmul.f32 %v1469, %v1438
    %v1486 = vmul.f32 %v1470, %v1439
    %v1487 = vmul.f32 %v1471, %v1439
    %v1488 = vmul.f32 %v1472, %v1439
    %v1489 = vmul.f32 %v1473, %v1439
    %1494 = vrot.lane.b32.xlu0 %v1256, 96
    %v1495 = vpop.permute.xlu0 %1494
    %1496 = vrot.lane.b32.xlu0 %v1258, 96
    %v1497 = vpop.permute.xlu0 %1496
    %1498 = vrot.lane.b32.xlu0 %v1260, 96
    %v1499 = vpop.permute.xlu0 %1498
    %1500 = vrot.lane.b32.xlu0 %v1262, 96
    %v1501 = vpop.permute.xlu0 %1500
    %v1507 = vsel %vm45, %v1482, 0
    %v1510 = vsel %vm45, %v1483, 0
    %v1513 = vsel %vm45, %v1484, 0
    %v1516 = vsel %vm45, %v1485, 0
    %v1519 = vsel %vm45, %v1486, 0
    %v1522 = vsel %vm45, %v1487, 0
    %v1525 = vsel %vm45, %v1488, 0
    %v1528 = vsel %vm45, %v1489, 0
    %1530 = vmatpush.msra.mxu0 0.0
    %1531 = vmatpush.msra.mxu0 0.0
    %1532 = vmatpush.msra.mxu0 0.0
    %1533 = vmatpush.msra.mxu0 0.0
    %1534 = vmatpush.msra.mxu0 0.0
    %1535 = vmatpush.msra.mxu0 0.0
    %1536 = vmatpush.msra.mxu0 0.0
    %1537 = vmatpush.msra.mxu0 0.0
    %1538 = vmatpush.msra.mxu0 0.0
    %1539 = vmatpush.msra.mxu0 0.0
    %1540 = vmatpush.msra.mxu0 0.0
    %1541 = vmatpush.msra.mxu0 0.0
    %1542 = vmatpush.msra.mxu0 %v1501
    %1543 = vmatpush.msra.mxu0 %v1499
    %1544 = vmatpush.msra.mxu0 %v1497
    %1545 = vmatpush.msra.mxu0 %v1495
    %1546 = vmatmul.f32.gmra.mxu0 %v1507
    %v1547 = vpop.f32.mrf.mxu0
    %v1548 = vadd.f32 0.0, %v1547
    %1549 = vmatmul.f32.gmra.mxu0 %v1510
    %v1550 = vpop.f32.mrf.mxu0
    %v1551 = vadd.f32 0.0, %v1550
    %1552 = vmatmul.f32.gmra.mxu0 %v1513
    %v1553 = vpop.f32.mrf.mxu0
    %v1554 = vadd.f32 0.0, %v1553
    %1555 = vmatmul.f32.gmra.mxu0 %v1516
    %v1556 = vpop.f32.mrf.mxu0
    %v1557 = vadd.f32 0.0, %v1556
    %1558 = vmatmul.f32.gmra.mxu0 %v1519
    %v1559 = vpop.f32.mrf.mxu0
    %v1560 = vadd.f32 0.0, %v1559
    %1561 = vmatmul.f32.gmra.mxu0 %v1522
    %v1562 = vpop.f32.mrf.mxu0
    %v1563 = vadd.f32 0.0, %v1562
    %1564 = vmatmul.f32.gmra.mxu0 %v1525
    %v1565 = vpop.f32.mrf.mxu0
    %v1566 = vadd.f32 0.0, %v1565
    %1567 = vmatmul.f32.gmra.mxu0 %v1528
    %v1568 = vpop.f32.mrf.mxu0
    %v1569 = vadd.f32 0.0, %v1568
    %1570 = vdwg.mxu0
    %v1571 = vsel %vm45, %v1548, -inf
    %v1572 = vrot.slane %v1571, 4
    %v1573 = vmax.f32 %v1571, %v1572
    %v1574 = vrot.slane %v1573, 2
    %v1575 = vmax.f32 %v1573, %v1574
    %v1576 = vrot.slane %v1575, 1
    %v1577 = vmax.f32 %v1575, %v1576
    %v1578 = vsel %vm45, %v1551, -inf
    %v1579 = vrot.slane %v1578, 4
    %v1580 = vmax.f32 %v1578, %v1579
    %v1581 = vrot.slane %v1580, 2
    %v1582 = vmax.f32 %v1580, %v1581
    %v1583 = vrot.slane %v1582, 1
    %v1584 = vmax.f32 %v1582, %v1583
    %v1585 = vsel %vm45, %v1554, -inf
    %v1586 = vrot.slane %v1585, 4
    %v1587 = vmax.f32 %v1585, %v1586
    %v1588 = vrot.slane %v1587, 2
    %v1589 = vmax.f32 %v1587, %v1588
    %v1590 = vrot.slane %v1589, 1
    %v1591 = vmax.f32 %v1589, %v1590
    %v1592 = vsel %vm45, %v1557, -inf
    %v1593 = vrot.slane %v1592, 4
    %v1594 = vmax.f32 %v1592, %v1593
    %v1595 = vrot.slane %v1594, 2
    %v1596 = vmax.f32 %v1594, %v1595
    %v1597 = vrot.slane %v1596, 1
    %v1598 = vmax.f32 %v1596, %v1597
    %v1599 = vsel %vm45, %v1560, -inf
    %v1600 = vrot.slane %v1599, 4
    %v1601 = vmax.f32 %v1599, %v1600
    %v1602 = vrot.slane %v1601, 2
    %v1603 = vmax.f32 %v1601, %v1602
    %v1604 = vrot.slane %v1603, 1
    %v1605 = vmax.f32 %v1603, %v1604
    %v1606 = vsel %vm45, %v1563, -inf
    %v1607 = vrot.slane %v1606, 4
    %v1608 = vmax.f32 %v1606, %v1607
    %v1609 = vrot.slane %v1608, 2
    %v1610 = vmax.f32 %v1608, %v1609
    %v1611 = vrot.slane %v1610, 1
    %v1612 = vmax.f32 %v1610, %v1611
    %v1613 = vsel %vm45, %v1566, -inf
    %v1614 = vrot.slane %v1613, 4
    %v1615 = vmax.f32 %v1613, %v1614
    %v1616 = vrot.slane %v1615, 2
    %v1617 = vmax.f32 %v1615, %v1616
    %v1618 = vrot.slane %v1617, 1
    %v1619 = vmax.f32 %v1617, %v1618
    %v1620 = vsel %vm45, %v1569, -inf
    %v1621 = vrot.slane %v1620, 4
    %v1622 = vmax.f32 %v1620, %v1621
    %v1623 = vrot.slane %v1622, 2
    %v1624 = vmax.f32 %v1622, %v1623
    %v1625 = vrot.slane %v1624, 1
    %v1626 = vmax.f32 %v1624, %v1625
    %v1627 = vsub.f32 %v1548, %v1577
    %v1628 = vsub.f32 %v1551, %v1584
    %v1629 = vsub.f32 %v1554, %v1591
    %v1630 = vsub.f32 %v1557, %v1598
    %v1631 = vsub.f32 %v1560, %v1605
    %v1632 = vsub.f32 %v1563, %v1612
    %v1633 = vsub.f32 %v1566, %v1619
    %v1634 = vsub.f32 %v1569, %v1626
    %v1635 = vmul.f32 %v1627, 1.442695
    %v1636 = vpow.pop %v1635
    %v1637 = vmul.f32 %v1628, 1.442695
    %v1638 = vpow.pop %v1637
    %v1639 = vmul.f32 %v1629, 1.442695
    %v1640 = vpow.pop %v1639
    %v1641 = vmul.f32 %v1630, 1.442695
    %v1642 = vpow.pop %v1641
    %v1643 = vmul.f32 %v1631, 1.442695
    %v1644 = vpow.pop %v1643
    %v1645 = vmul.f32 %v1632, 1.442695
    %v1646 = vpow.pop %v1645
    %v1647 = vmul.f32 %v1633, 1.442695
    %v1648 = vpow.pop %v1647
    %v1649 = vmul.f32 %v1634, 1.442695
    %v1650 = vpow.pop %v1649
    %v1651 = vsel %vm45, %v1636, 0.0
    %v1652 = vrot.slane %v1651, 4
    %v1653 = vadd.f32 %v1651, %v1652
    %v1654 = vrot.slane %v1653, 2
    %v1655 = vadd.f32 %v1653, %v1654
    %v1656 = vrot.slane %v1655, 1
    %v1657 = vadd.f32 %v1655, %v1656
    %v1658 = vsel %vm45, %v1638, 0.0
    %v1659 = vrot.slane %v1658, 4
    %v1660 = vadd.f32 %v1658, %v1659
    %v1661 = vrot.slane %v1660, 2
    %v1662 = vadd.f32 %v1660, %v1661
    %v1663 = vrot.slane %v1662, 1
    %v1664 = vadd.f32 %v1662, %v1663
    %v1665 = vsel %vm45, %v1640, 0.0
    %v1666 = vrot.slane %v1665, 4
    %v1667 = vadd.f32 %v1665, %v1666
    %v1668 = vrot.slane %v1667, 2
    %v1669 = vadd.f32 %v1667, %v1668
    %v1670 = vrot.slane %v1669, 1
    %v1671 = vadd.f32 %v1669, %v1670
    %v1672 = vsel %vm45, %v1642, 0.0
    %v1673 = vrot.slane %v1672, 4
    %v1674 = vadd.f32 %v1672, %v1673
    %v1675 = vrot.slane %v1674, 2
    %v1676 = vadd.f32 %v1674, %v1675
    %v1677 = vrot.slane %v1676, 1
    %v1678 = vadd.f32 %v1676, %v1677
    %v1679 = vsel %vm45, %v1644, 0.0
    %v1680 = vrot.slane %v1679, 4
    %v1681 = vadd.f32 %v1679, %v1680
    %v1682 = vrot.slane %v1681, 2
    %v1683 = vadd.f32 %v1681, %v1682
    %v1684 = vrot.slane %v1683, 1
    %v1685 = vadd.f32 %v1683, %v1684
    %v1686 = vsel %vm45, %v1646, 0.0
    %v1687 = vrot.slane %v1686, 4
    %v1688 = vadd.f32 %v1686, %v1687
    %v1689 = vrot.slane %v1688, 2
    %v1690 = vadd.f32 %v1688, %v1689
    %v1691 = vrot.slane %v1690, 1
    %v1692 = vadd.f32 %v1690, %v1691
    %v1693 = vsel %vm45, %v1648, 0.0
    %v1694 = vrot.slane %v1693, 4
    %v1695 = vadd.f32 %v1693, %v1694
    %v1696 = vrot.slane %v1695, 2
    %v1697 = vadd.f32 %v1695, %v1696
    %v1698 = vrot.slane %v1697, 1
    %v1699 = vadd.f32 %v1697, %v1698
    %v1700 = vsel %vm45, %v1650, 0.0
    %v1701 = vrot.slane %v1700, 4
    %v1702 = vadd.f32 %v1700, %v1701
    %v1703 = vrot.slane %v1702, 2
    %v1704 = vadd.f32 %v1702, %v1703
    %v1705 = vrot.slane %v1704, 1
    %v1706 = vadd.f32 %v1704, %v1705
    %v1707 = vrcp.pop %v1657
    %v1708 = vmul.f32 %v1657, %v1707
    %v1709 = vsub.f32 1.0, %v1708
    %v1710 = vmul.f32 %v1707, %v1709
    %v1711 = vadd.f32 %v1707, %v1710
    %vm1712 = vweird.f32 %v1657
    %vm1713 = vweird.f32 %v1707
    %vm1714 = vmor %vm1712, %vm1713
    %v1715 = vsel %vm1714, %v1707, %v1711
    %v1716 = vand.u32 2147483647, %v1657
    %vm1717 = vcmp.eq.f32.partialorder %v1716, 8.507059e+37
    %v1718 = vand.u32 %v1657, 2147483648
    %v1719 = vor.u32 1.1754944e-38, %v1718
    %v1720 = vsel %vm1717, %v1719, %v1715
    %v1721 = vmul.f32 %v1636, %v1720
    %v1722 = vrcp.pop %v1664
    %v1723 = vmul.f32 %v1664, %v1722
    %v1724 = vsub.f32 1.0, %v1723
    %v1725 = vmul.f32 %v1722, %v1724
    %v1726 = vadd.f32 %v1722, %v1725
    %vm1727 = vweird.f32 %v1664
    %vm1728 = vweird.f32 %v1722
    %vm1729 = vmor %vm1727, %vm1728
    %v1730 = vsel %vm1729, %v1722, %v1726
    %v1731 = vand.u32 2147483647, %v1664
    %vm1732 = vcmp.eq.f32.partialorder %v1731, 8.507059e+37
    %v1733 = vand.u32 %v1664, 2147483648
    %v1734 = vor.u32 1.1754944e-38, %v1733
    %v1735 = vsel %vm1732, %v1734, %v1730
    %v1736 = vmul.f32 %v1638, %v1735
    %v1737 = vrcp.pop %v1671
    %v1738 = vmul.f32 %v1671, %v1737
    %v1739 = vsub.f32 1.0, %v1738
    %v1740 = vmul.f32 %v1737, %v1739
    %v1741 = vadd.f32 %v1737, %v1740
    %vm1742 = vweird.f32 %v1671
    %vm1743 = vweird.f32 %v1737
    %vm1744 = vmor %vm1742, %vm1743
    %v1745 = vsel %vm1744, %v1737, %v1741
    %v1746 = vand.u32 2147483647, %v1671
    %vm1747 = vcmp.eq.f32.partialorder %v1746, 8.507059e+37
    %v1748 = vand.u32 %v1671, 2147483648
    %v1749 = vor.u32 1.1754944e-38, %v1748
    %v1750 = vsel %vm1747, %v1749, %v1745
    %v1751 = vmul.f32 %v1640, %v1750
    %v1752 = vrcp.pop %v1678
    %v1753 = vmul.f32 %v1678, %v1752
    %v1754 = vsub.f32 1.0, %v1753
    %v1755 = vmul.f32 %v1752, %v1754
    %v1756 = vadd.f32 %v1752, %v1755
    %vm1757 = vweird.f32 %v1678
    %vm1758 = vweird.f32 %v1752
    %vm1759 = vmor %vm1757, %vm1758
    %v1760 = vsel %vm1759, %v1752, %v1756
    %v1761 = vand.u32 2147483647, %v1678
    %vm1762 = vcmp.eq.f32.partialorder %v1761, 8.507059e+37
    %v1763 = vand.u32 %v1678, 2147483648
    %v1764 = vor.u32 1.1754944e-38, %v1763
    %v1765 = vsel %vm1762, %v1764, %v1760
    %v1766 = vmul.f32 %v1642, %v1765
    %v1767 = vrcp.pop %v1685
    %v1768 = vmul.f32 %v1685, %v1767
    %v1769 = vsub.f32 1.0, %v1768
    %v1770 = vmul.f32 %v1767, %v1769
    %v1771 = vadd.f32 %v1767, %v1770
    %vm1772 = vweird.f32 %v1685
    %vm1773 = vweird.f32 %v1767
    %vm1774 = vmor %vm1772, %vm1773
    %v1775 = vsel %vm1774, %v1767, %v1771
    %v1776 = vand.u32 2147483647, %v1685
    %vm1777 = vcmp.eq.f32.partialorder %v1776, 8.507059e+37
    %v1778 = vand.u32 %v1685, 2147483648
    %v1779 = vor.u32 1.1754944e-38, %v1778
    %v1780 = vsel %vm1777, %v1779, %v1775
    %v1781 = vmul.f32 %v1644, %v1780
    %v1782 = vrcp.pop %v1692
    %v1783 = vmul.f32 %v1692, %v1782
    %v1784 = vsub.f32 1.0, %v1783
    %v1785 = vmul.f32 %v1782, %v1784
    %v1786 = vadd.f32 %v1782, %v1785
    %vm1787 = vweird.f32 %v1692
    %vm1788 = vweird.f32 %v1782
    %vm1789 = vmor %vm1787, %vm1788
    %v1790 = vsel %vm1789, %v1782, %v1786
    %v1791 = vand.u32 2147483647, %v1692
    %vm1792 = vcmp.eq.f32.partialorder %v1791, 8.507059e+37
    %v1793 = vand.u32 %v1692, 2147483648
    %v1794 = vor.u32 1.1754944e-38, %v1793
    %v1795 = vsel %vm1792, %v1794, %v1790
    %v1796 = vmul.f32 %v1646, %v1795
    %v1797 = vrcp.pop %v1699
    %v1798 = vmul.f32 %v1699, %v1797
    %v1799 = vsub.f32 1.0, %v1798
    %v1800 = vmul.f32 %v1797, %v1799
    %v1801 = vadd.f32 %v1797, %v1800
    %vm1802 = vweird.f32 %v1699
    %vm1803 = vweird.f32 %v1797
    %vm1804 = vmor %vm1802, %vm1803
    %v1805 = vsel %vm1804, %v1797, %v1801
    %v1806 = vand.u32 2147483647, %v1699
    %vm1807 = vcmp.eq.f32.partialorder %v1806, 8.507059e+37
    %v1808 = vand.u32 %v1699, 2147483648
    %v1809 = vor.u32 1.1754944e-38, %v1808
    %v1810 = vsel %vm1807, %v1809, %v1805
    %v1811 = vmul.f32 %v1648, %v1810
    %v1812 = vrcp.pop %v1706
    %v1813 = vmul.f32 %v1706, %v1812
    %v1814 = vsub.f32 1.0, %v1813
    %v1815 = vmul.f32 %v1812, %v1814
    %v1816 = vadd.f32 %v1812, %v1815
    %vm1817 = vweird.f32 %v1706
    %vm1818 = vweird.f32 %v1812
    %vm1819 = vmor %vm1817, %vm1818
    %v1820 = vsel %vm1819, %v1812, %v1816
    %v1821 = vand.u32 2147483647, %v1706
    %vm1822 = vcmp.eq.f32.partialorder %v1821, 8.507059e+37
    %v1823 = vand.u32 %v1706, 2147483648
    %v1824 = vor.u32 1.1754944e-38, %v1823
    %v1825 = vsel %vm1822, %v1824, %v1820
    %v1826 = vmul.f32 %v1650, %v1825
    %1829 = vrot.lane.b32.xlu0 %v1445, 96
    %v1830 = vpop.permute.xlu0 %1829
    %1831 = vrot.lane.b32.xlu0 %v1446, 96
    %v1832 = vpop.permute.xlu0 %1831
    %v1835 = vmul.f32 %v1721, %v1830
    %v1836 = vmul.f32 %v1736, %v1830
    %v1837 = vmul.f32 %v1751, %v1830
    %v1838 = vmul.f32 %v1766, %v1830
    %v1839 = vmul.f32 %v1781, %v1832
    %v1840 = vmul.f32 %v1796, %v1832
    %v1841 = vmul.f32 %v1811, %v1832
    %v1842 = vmul.f32 %v1826, %v1832
    %v1843 = vsel %vm45, %v1835, 0.0
    %v1844 = vrot.slane %v1843, 4
    %v1845 = vadd.f32 %v1843, %v1844
    %v1846 = vrot.slane %v1845, 2
    %v1847 = vadd.f32 %v1845, %v1846
    %v1848 = vrot.slane %v1847, 1
    %v1849 = vadd.f32 %v1847, %v1848
    %v1850 = vsel %vm45, %v1836, 0.0
    %v1851 = vrot.slane %v1850, 4
    %v1852 = vadd.f32 %v1850, %v1851
    %v1853 = vrot.slane %v1852, 2
    %v1854 = vadd.f32 %v1852, %v1853
    %v1855 = vrot.slane %v1854, 1
    %v1856 = vadd.f32 %v1854, %v1855
    %v1857 = vsel %vm45, %v1837, 0.0
    %v1858 = vrot.slane %v1857, 4
    %v1859 = vadd.f32 %v1857, %v1858
    %v1860 = vrot.slane %v1859, 2
    %v1861 = vadd.f32 %v1859, %v1860
    %v1862 = vrot.slane %v1861, 1
    %v1863 = vadd.f32 %v1861, %v1862
    %v1864 = vsel %vm45, %v1838, 0.0
    %v1865 = vrot.slane %v1864, 4
    %v1866 = vadd.f32 %v1864, %v1865
    %v1867 = vrot.slane %v1866, 2
    %v1868 = vadd.f32 %v1866, %v1867
    %v1869 = vrot.slane %v1868, 1
    %v1870 = vadd.f32 %v1868, %v1869
    %v1871 = vsel %vm45, %v1839, 0.0
    %v1872 = vrot.slane %v1871, 4
    %v1873 = vadd.f32 %v1871, %v1872
    %v1874 = vrot.slane %v1873, 2
    %v1875 = vadd.f32 %v1873, %v1874
    %v1876 = vrot.slane %v1875, 1
    %v1877 = vadd.f32 %v1875, %v1876
    %v1878 = vsel %vm45, %v1840, 0.0
    %v1879 = vrot.slane %v1878, 4
    %v1880 = vadd.f32 %v1878, %v1879
    %v1881 = vrot.slane %v1880, 2
    %v1882 = vadd.f32 %v1880, %v1881
    %v1883 = vrot.slane %v1882, 1
    %v1884 = vadd.f32 %v1882, %v1883
    %v1885 = vsel %vm45, %v1841, 0.0
    %v1886 = vrot.slane %v1885, 4
    %v1887 = vadd.f32 %v1885, %v1886
    %v1888 = vrot.slane %v1887, 2
    %v1889 = vadd.f32 %v1887, %v1888
    %v1890 = vrot.slane %v1889, 1
    %v1891 = vadd.f32 %v1889, %v1890
    %v1892 = vsel %vm45, %v1842, 0.0
    %v1893 = vrot.slane %v1892, 4
    %v1894 = vadd.f32 %v1892, %v1893
    %v1895 = vrot.slane %v1894, 2
    %v1896 = vadd.f32 %v1894, %v1895
    %v1897 = vrot.slane %v1896, 1
    %v1898 = vadd.f32 %v1896, %v1897
    %v1907 = vsel %vm1014, %v1856, %v1849
    %v1908 = vsel %vm1016, %v1863, %v1907
    %v1909 = vsel %vm1018, %v1870, %v1908
    %v1910 = vsel %vm1020, %v1877, %v1909
    %v1911 = vsel %vm1022, %v1884, %v1910
    %v1912 = vsel %vm1024, %v1891, %v1911
    %v1913 = vsel %vm1026, %v1898, %v1912
    %1914 = vrot.lane.b32.xlu0 %v1255, 32
    %v1915 = vpop.permute.xlu0 %1914
    %1916 = vrot.lane.b32.xlu0 %v1257, 32
    %v1917 = vpop.permute.xlu0 %1916
    %1918 = vrot.lane.b32.xlu0 %v1259, 32
    %v1919 = vpop.permute.xlu0 %1918
    %1920 = vrot.lane.b32.xlu0 %v1261, 32
    %v1921 = vpop.permute.xlu0 %1920
    %v1926 = vsel %vm45, %v1913, 0
    %1928 = vmatpush.msra.mxu0 0.0
    %1929 = vmatpush.msra.mxu0 0.0
    %1930 = vmatpush.msra.mxu0 0.0
    %1931 = vmatpush.msra.mxu0 0.0
    %1932 = vmatpush.msra.mxu0 0.0
    %1933 = vmatpush.msra.mxu0 0.0
    %1934 = vmatpush.msra.mxu0 0.0
    %1935 = vmatpush.msra.mxu0 0.0
    %1936 = vmatpush.msra.mxu0 0.0
    %1937 = vmatpush.msra.mxu0 0.0
    %1938 = vmatpush.msra.mxu0 0.0
    %1939 = vmatpush.msra.mxu0 0.0
    %1940 = vmatpush.msra.mxu0 %v1921
    %1941 = vmatpush.msra.mxu0 %v1919
    %1942 = vmatpush.msra.mxu0 %v1917
    %1943 = vmatpush.msra.mxu0 %v1915
    %1944 = vmatmul.f32.gmra.mxu0 %v1926
    %v1945 = vpop.f32.mrf.mxu0
    %v1946 = vadd.f32 0.0, %v1945
    %1947 = vdwg.mxu0
    %v1949 = vrot.slane %v1946, 4
    %v1951 = vperm.slane %v1252, 7
    %v1952 = vadd.f32 %v1946, %v1951
    %v1953 = vadd.f32 %v1949, %v1951
    %v1954 = vsel %vm1263, %v1952, 0.0
    %1955 = vadd.xlane.f32.xlu0 %v1954
    %v1956 = vpop.xlane.xlu0 %1955
    %v1957 = vsel %vm1263, %v1953, 0.0
    %1958 = vadd.xlane.f32.xlu0 %v1957
    %v1959 = vpop.xlane.xlu0 %1958
    %v1960 = vmul.f32 %v1956, %v58
    %v1961 = vmul.f32 %v1959, %v58
    %v1962 = vsub.f32 %v1952, %v1960
    %v1963 = vsub.f32 %v1953, %v1961
    %v1964 = vmul.f32 %v1962, %v1962
    %v1965 = vmul.f32 %v1963, %v1963
    %v1966 = vsel %vm1263, %v1964, 0.0
    %1967 = vadd.xlane.f32.xlu0 %v1966
    %v1968 = vpop.xlane.xlu0 %1967
    %v1969 = vsel %vm1263, %v1965, 0.0
    %1970 = vadd.xlane.f32.xlu0 %v1969
    %v1971 = vpop.xlane.xlu0 %1970
    %v1972 = vmul.f32 %v1968, %v58
    %v1973 = vmul.f32 %v1971, %v58
    %v1974 = vadd.f32 %v1972, 1e-05
    %v1975 = vadd.f32 %v1973, 1e-05
    %v1976 = vrsqrt.pop %v1974
    %v1977 = vmul.f32 %v1976, %v1974
    %v1978 = vmul.f32 %v1977, %v1976
    %v1979 = vmul.f32 0.5, %v1978
    %v1980 = vsub.f32 1.5, %v1979
    %v1981 = vmul.f32 %v1976, %v1980
    %vm1982 = vweird.f32 %v1974
    %vm1983 = vweird.f32 %v1976
    %vm1984 = vmor %vm1982, %vm1983
    %v1985 = vsel %vm1984, %v1976, %v1981
    %v1986 = vrsqrt.pop %v1975
    %v1987 = vmul.f32 %v1986, %v1975
    %v1988 = vmul.f32 %v1987, %v1986
    %v1989 = vmul.f32 0.5, %v1988
    %v1990 = vsub.f32 1.5, %v1989
    %v1991 = vmul.f32 %v1986, %v1990
    %vm1992 = vweird.f32 %v1975
    %vm1993 = vweird.f32 %v1986
    %vm1994 = vmor %vm1992, %vm1993
    %v1995 = vsel %vm1994, %v1986, %v1991
    %v1996 = vmul.f32 %v1962, %v1985
    %v1997 = vmul.f32 %v1963, %v1995
    %v1998 = vperm.slane %v1252, 5
    %v1999 = vmul.f32 %v1996, %v1998
    %v2000 = vmul.f32 %v1997, %v1998
    %v2001 = vperm.slane %v1252, 6
    %v2002 = vadd.f32 %v1999, %v2001
    %v2003 = vadd.f32 %v2000, %v2001
    %v2004 = vadd.f32 %v1312, %v2002
    %v2005 = vadd.f32 %v1313, %v2003
    %2008 = vst [vmem:[#allocation1] ss:$2 sm:$0xff] %v2004
    %s2009 = scalar_lea.vmem [#allocation1], 1
    %2010 = vst [vmem:[%s2009] ss:$2 sm:$0xff] %v2005
    %v2011 = vld.sshfl [vmem:[#allocation1] sm:$0xff pattern:$0x75316420]
    %v2012 = vsel %vm45, %v2011, 0
    %2014 = vmatpush.msra.mxu0 0.0
    %2015 = vmatpush.msra.mxu0 0.0
    %2016 = vmatpush.msra.mxu0 0.0
    %2017 = vmatpush.msra.mxu0 0.0
    %2018 = vmatpush.msra.mxu0 0.0
    %2019 = vmatpush.msra.mxu0 0.0
    %2020 = vmatpush.msra.mxu0 0.0
    %2021 = vmatpush.msra.mxu0 0.0
    %2022 = vmatpush.msra.mxu0 0.0
    %2023 = vmatpush.msra.mxu0 0.0
    %2024 = vmatpush.msra.mxu0 0.0
    %2025 = vmatpush.msra.mxu0 0.0
    %2026 = vmatpush.msra.mxu0 %v1262
    %2027 = vmatpush.msra.mxu0 %v1260
    %2028 = vmatpush.msra.mxu0 %v1258
    %2029 = vmatpush.msra.mxu0 %v1256
    %2030 = vmatmul.f32.gmra.mxu0 %v2012
    %v2031 = vpop.f32.mrf.mxu0
    %v2032 = vadd.f32 0.0, %v2031
    %2033 = vdwg.mxu0
    %v2035 = vrot.slane %v2032, 4
    %v2037 = vperm.slane %v1253, 0
    %v2038 = vadd.f32 %v2032, %v2037
    %v2039 = vadd.f32 %v2035, %v2037
    %v2040 = vmul.f32 %v2038, 0.5
    %v2041 = vmul.f32 %v2039, 0.5
    %v2042 = vmul.f32 %v2038, 0.70710677
    %v2043 = vmul.f32 %v2039, 0.70710677
    %vm2044 = vcmp.ge.f32.partialorder %v2042, 0.0
    %vm2045 = vcmp.ge.f32.partialorder %v2043, 0.0
    %v2046 = vsel %vm2044, 1.0, -1.0
    %v2047 = vsel %vm2045, 1.0, -1.0
    %v2048 = vand.u32 2147483647, %v2042
    %v2049 = vand.u32 2147483647, %v2043
    %v2050 = vmul.f32 %v2048, 0.3275911
    %v2051 = vmul.f32 %v2049, 0.3275911
    %v2052 = vadd.f32 %v2050, 1.0
    %v2053 = vadd.f32 %v2051, 1.0
    %v2054 = vrcp.pop %v2052
    %v2055 = vmul.f32 %v2052, %v2054
    %v2056 = vsub.f32 1.0, %v2055
    %v2057 = vmul.f32 %v2054, %v2056
    %v2058 = vadd.f32 %v2054, %v2057
    %vm2059 = vweird.f32 %v2052
    %vm2060 = vweird.f32 %v2054
    %vm2061 = vmor %vm2059, %vm2060
    %v2062 = vsel %vm2061, %v2054, %v2058
    %v2063 = vand.u32 2147483647, %v2052
    %vm2064 = vcmp.eq.f32.partialorder %v2063, 8.507059e+37
    %v2065 = vand.u32 %v2052, 2147483648
    %v2066 = vor.u32 1.1754944e-38, %v2065
    %v2067 = vsel %vm2064, %v2066, %v2062
    %v2068 = vmul.f32 1.0, %v2067
    %v2069 = vrcp.pop %v2053
    %v2070 = vmul.f32 %v2053, %v2069
    %v2071 = vsub.f32 1.0, %v2070
    %v2072 = vmul.f32 %v2069, %v2071
    %v2073 = vadd.f32 %v2069, %v2072
    %vm2074 = vweird.f32 %v2053
    %vm2075 = vweird.f32 %v2069
    %vm2076 = vmor %vm2074, %vm2075
    %v2077 = vsel %vm2076, %v2069, %v2073
    %v2078 = vand.u32 2147483647, %v2053
    %vm2079 = vcmp.eq.f32.partialorder %v2078, 8.507059e+37
    %v2080 = vand.u32 %v2053, 2147483648
    %v2081 = vor.u32 1.1754944e-38, %v2080
    %v2082 = vsel %vm2079, %v2081, %v2077
    %v2083 = vmul.f32 1.0, %v2082
    %v2084 = vmul.f32 %v2068, 1.0614054
    %v2085 = vmul.f32 %v2083, 1.0614054
    %v2086 = vadd.f32 %v2084, -1.4531521
    %v2087 = vadd.f32 %v2085, -1.4531521
    %v2088 = vmul.f32 %v2086, %v2068
    %v2089 = vmul.f32 %v2087, %v2083
    %v2090 = vadd.f32 %v2088, 1.4214138
    %v2091 = vadd.f32 %v2089, 1.4214138
    %v2092 = vmul.f32 %v2090, %v2068
    %v2093 = vmul.f32 %v2091, %v2083
    %v2094 = vadd.f32 %v2092, -0.28449672
    %v2095 = vadd.f32 %v2093, -0.28449672
    %v2096 = vmul.f32 %v2094, %v2068
    %v2097 = vmul.f32 %v2095, %v2083
    %v2098 = vadd.f32 %v2096, 0.2548296
    %v2099 = vadd.f32 %v2097, 0.2548296
    %v2100 = vmul.f32 %v2098, %v2068
    %v2101 = vmul.f32 %v2099, %v2083
    %v2102 = vsub.f32 0.0, %v2048
    %v2103 = vsub.f32 0.0, %v2049
    %v2104 = vmul.f32 %v2102, %v2048
    %v2105 = vmul.f32 %v2103, %v2049
    %v2106 = vmul.f32 %v2104, 1.442695
    %v2107 = vpow.pop %v2106
    %v2108 = vmul.f32 %v2105, 1.442695
    %v2109 = vpow.pop %v2108
    %v2110 = vmul.f32 %v2100, %v2107
    %v2111 = vmul.f32 %v2101, %v2109
    %v2112 = vsub.f32 1.0, %v2110
    %v2113 = vsub.f32 1.0, %v2111
    %v2114 = vmul.f32 %v2046, %v2112
    %v2115 = vmul.f32 %v2047, %v2113
    %v2116 = vadd.f32 %v2114, 1.0
    %v2117 = vadd.f32 %v2115, 1.0
    %v2118 = vmul.f32 %v2040, %v2116
    %v2119 = vmul.f32 %v2041, %v2117
    %v2120 = vadd.f32 %v2004, %v2118
    %v2121 = vadd.f32 %v2005, %v2119
    %2122 = vst.msk [vmem:[%s4] sm:$0xf] %vm1263, %v2120
    %2123 = vst.msk [vmem:[%s4 + $0x10] sm:$0xf] %vm1263, %v2121
    // Predicated region
    $region22: #{tpu_custom_call.1} parent=1 // pred_check
      _
    $region23: #{tpu_custom_call.1} parent=1 // pred_check_branch
      %2125 = sbr.rel (0) target = $region25
    $region24: #{tpu_custom_call.1} parent=1 // pred_region
      _
    $region25: #{tpu_custom_call.1} parent=1 // pred_fallthru
      _
    // Predicated region
    $region26: #{tpu_custom_call.1} parent=1 // pred_check
      _
    $region27: #{tpu_custom_call.1} parent=1 // pred_check_branch
      %2127 = sbr.rel (0) target = $region29
    $region28: #{tpu_custom_call.1} parent=1 // pred_region
      _
    $region29: #{tpu_custom_call.1} parent=1 // pred_fallthru
      _
    %2128 = vsyncpa [#allocation3], 1

</llo_original>
